<compile_context>
chip_gen: v7x
topology: tpu7x:2x2x1
jax: 0.10.0
libtpu: 0.0.40
codegen_flags: <defaults>
</compile_context>

<pallas_src>
import numpy as np

import jax
import jax.numpy as jnp
from jax.experimental import pallas as pl
from jax.experimental.pallas import tpu as pltpu


LANES = 128
_VMEM_LIMIT = 32 * 1024 * 1024      # explicit scoped-VMEM limit (v5e default is only 16 MiB)


def _round_up(x, m):
    return -(-x // m) * m


# ---------------------------------------------------------------------------
# Pallas kernels
# ---------------------------------------------------------------------------
def _conv_bias_kernel(g_ref, w_ref, b_ref, o_ref):
    # g: [tile, K3*Cin] bf16 gathered neighbour features, w: [K3*Cin, Cout_pad] bf16.
    o_ref[...] = (
        jnp.dot(g_ref[...], w_ref[...], preferred_element_type=jnp.float32)
        + b_ref[...]
    )


def make_conv_gate_kernel(cout):
    """channel_conv kernel fused with the correlation-gate row reductions.

    Output block is lane-dense [tile, cout_pad]: columns [0, cout) hold
    conv + bias, column `cout` holds t = rowsum(conv) and column `cout + 1`
    holds sq = rowsum(conv * conv) (corrtran / corrtran_one inputs).  The
    padded weight/bias columns are zero so the rowsums only see real channels;
    the reductions ride the idle VPU/XLU slots under the MXU.
    """
    def kernel(g_ref, w_ref, b_ref, o_ref):
        conv = (
            jnp.dot(g_ref[...], w_ref[...], preferred_element_type=jnp.float32)
            + b_ref[...]
        )
        t = jnp.sum(conv, axis=1, keepdims=True)
        sq = jnp.sum(conv * conv, axis=1, keepdims=True)
        col = jax.lax.broadcasted_iota(jnp.int32, conv.shape, 1)
        o_ref[...] = jnp.where(col == cout, t,
                               jnp.where(col == cout + 1, sq, conv))
    return kernel


# ---------------------------------------------------------------------------
# Tiling helpers
# ---------------------------------------------------------------------------
def choose_tiling(n_rows, row_bytes, vmem_budget_bytes=12 << 20, max_tile=2048):
    """Row-tile size (multiple of 8) and padded row count.

    `row_bytes` is the per-row footprint of the double-buffered streamed
    operands (bf16 gathered slab + f32 output tile), so the tile adapts to the
    element size.  The tile is capped so the in-flight buffers stay well inside
    the explicit 32 MiB scoped-VMEM limit on every generation (v7x has only
    64 MiB physical per TensorCore), and the row axis is split into >= 2 grid
    steps when possible so the "parallel" grid axis can shard across v7x's two
    TensorCores.
    """
    n8 = _round_up(max(n_rows, 1), 8)
    cap = max(8, (vmem_budget_bytes // (2 * max(row_bytes, 1))) // 8 * 8)
    tile = int(min(max_tile, cap, n8))
    if tile == n8 and n8 >= 16:               # make room for >= 2 grid steps (megacore)
        tile = max(8, _round_up(n8 // 2, 8))
    npad = _round_up(n8, tile)
    return tile, npad


def gather_folded(feats, nbr_rows, npad, dtype=jnp.bfloat16):
    """Gather neighbour features into the lane-dense folded layout
    [npad, K3*C] (contraction index order = (offset, channel)), casting the
    streamed matmul operand to bf16.  Index value == N selects the zero row.

    # TODO(synk): this slab still round-trips through HBM (XLA gather write +
    # pallas_call read); replace with an in-kernel gather against a
    # VMEM-resident feature table once Mosaic supports arbitrary-length row
    # gathers, gated per generation on table residency (<= ~40 MiB on v7x).
    """
    n, c = feats.shape
    m, k3 = nbr_rows.shape
    f_ext = jnp.concatenate([feats.astype(dtype), jnp.zeros((1, c), dtype)], axis=0)
    nbr_p = jnp.pad(nbr_rows, ((0, npad - m), (0, 0)), constant_values=n)
    g = jnp.take(f_ext, nbr_p, axis=0)                     # [npad, K3, C]
    return g.reshape(npad, k3 * c)


# ---------------------------------------------------------------------------
# Kernel map (coordinate neighbour search) -- sort + searchsorted glue
# ---------------------------------------------------------------------------
def kernel_offsets(kernel_size):
    r = kernel_size // 2
    offs = [(dx, dy, dz)
            for dx in range(-r, r + 1)
            for dy in range(-r, r + 1)
            for dz in range(-r, r + 1)]
    return jnp.array(offs, jnp.int32)                      # [K^3, 3]


def build_neighbor_indices(coords, kernel_size, tensor_stride=1):
    """[N, K^3] feature-row index of each (point, offset) neighbour, or N if
    that coordinate is absent.  O(K^3 N log N) via packed-key searchsorted."""
    n = coords.shape[0]
    offs = kernel_offsets(kernel_size) * tensor_stride     # [K3, 3]
    k3 = offs.shape[0]
    r = (kernel_size // 2) * tensor_stride

    c0 = coords.astype(jnp.int32)
    c0 = c0 - c0.min(axis=0)
    base = c0 + jnp.array([0, r, r, r], jnp.int32)         # targets stay >= 0
    span = c0.max(axis=0) + jnp.array([0, 2 * r, 2 * r, 2 * r], jnp.int32) + 1
    # TODO(synk): int32 packing overflows for huge spatial extents; switch to a
    # two-level (batch, spatial) key in that regime.
    s2 = span[3]
    s1 = span[2] * s2
    s0 = span[1] * s1

    def pack(q):
        return q[..., 0] * s0 + q[..., 1] * s1 + q[..., 2] * s2 + q[..., 3]

    keys = pack(base)                                      # [N], unique
    order = jnp.argsort(keys)
    keys_sorted = keys[order]

    offs4 = jnp.concatenate([jnp.zeros((k3, 1), jnp.int32), offs], axis=1)
    tkeys = pack(base[:, None, :] + offs4[None, :, :])     # [N, K3]
    pos = jnp.clip(jnp.searchsorted(keys_sorted, tkeys), 0, n - 1)
    found = keys_sorted[pos] == tkeys
    idx = order[pos].astype(jnp.int32)
    return jnp.where(found, idx, n)


# ---------------------------------------------------------------------------
# channel_conv: K^3 sparse conv + bias over all points, fused gate reductions
# ---------------------------------------------------------------------------
def channel_conv_with_gate(feats, w, b, nbr):
    n, cin = feats.shape
    k3 = nbr.shape[1]
    cout = w.shape[2]
    kc = k3 * cin
    cout_pad = _round_up(cout + 2, LANES)                  # lane-dense out (+2 aux cols)
    tile, npad = choose_tiling(n, kc * 2 + cout_pad * 4)

    g = gather_folded(feats, nbr, npad)
    w_fold = jnp.pad(w.reshape(kc, cout).astype(jnp.bfloat16),
                     ((0, 0), (0, cout_pad - cout)))
    b_fold = jnp.pad(b.astype(jnp.float32), (0, cout_pad - cout)).reshape(1, cout_pad)

    out = pl.pallas_call(
        make_conv_gate_kernel(cout),
        out_shape=jax.ShapeDtypeStruct((npad, cout_pad), jnp.float32),
        grid=(npad // tile,),
        in_specs=[pl.BlockSpec((tile, kc), lambda i: (i, 0)),
                  pl.BlockSpec((kc, cout_pad), lambda i: (0, 0)),
                  pl.BlockSpec((1, cout_pad), lambda i: (0, 0))],
        out_specs=pl.BlockSpec((tile, cout_pad), lambda i: (i, 0)),
        compiler_params=pltpu.CompilerParams(
            dimension_semantics=("parallel",),
            vmem_limit_bytes=_VMEM_LIMIT),
    )(g, w_fold, b_fold)

    x = out[:n, :cout]
    t = out[:n, cout]
    sq = out[:n, cout + 1]
    return x, t, sq


# ---------------------------------------------------------------------------
# Adaconv: device-side correlation gate -> dw conv on strong rows -> union
# ---------------------------------------------------------------------------
def topk_strong_mask(batch_ids, corr, th):
    """Per-batch hard top-k gate (k = int(n_b * th / 3.21)), fully device-side:
    rank points within their batch by descending corr and mark rank < k_b."""
    n = corr.shape[0]
    order = jnp.lexsort((-corr, batch_ids))                # batch asc, corr desc
    sb = batch_ids[order]
    start = jnp.searchsorted(sb, sb, side="left").astype(jnp.int32)
    end = jnp.searchsorted(sb, sb, side="right").astype(jnp.int32)
    n_b = (end - start).astype(jnp.float32)
    k_b = jnp.floor(n_b * (th / 3.21) + 1e-6).astype(jnp.int32)
    rank = jnp.arange(n, dtype=jnp.int32) - start
    strong_sorted = rank < k_b
    return jnp.zeros((n,), jnp.bool_).at[order].set(strong_sorted)


def adaconv(coords, x_feats, t, sq, w_dw, b_dw, th, nbr3, nbrk):
    """Correlation gate -> dw conv restricted to the strong point set -> union.

    The dw conv runs only over the compacted, statically bounded strong rows;
    weak rows keep their original features, so the union is a cheap scatter."""
    n, c = x_feats.shape
    k3 = nbrk.shape[1]
    cout = w_dw.shape[2]
    assert cout == c, "union requires dw out_channels == in_channels"

    # corr = corrtran(x) / corrtran_one(x*x): all-ones 3x3x3 kernel with the
    # centre tap zeroed over t = rowsum(x), normalised by sq = rowsum(x*x).
    noncenter = jnp.any(kernel_offsets(3) != 0, axis=1).astype(t.dtype)   # [27]
    t_ext = jnp.concatenate([t, jnp.zeros((1,), t.dtype)])
    num = (t_ext[nbr3] * noncenter[None, :]).sum(axis=1)                  # [N]
    # TODO(synk): the torch reference divides with no epsilon (inf/NaN on
    # all-zero rows); the epsilon only affects those degenerate rows.
    corr = num / (sq + 1e-12)
    strong = topk_strong_mask(coords[:, 0], corr, th)

    # Compact strong-row indices to a static bound: sum_b floor(n_b*th/3.21)
    # <= floor(N*th/3.21), so the dw conv does ~th/3.21 of the full work.
    s_max = max(1, min(n, int(n * th / 3.21) + 8))
    order = jnp.argsort(jnp.logical_not(strong))           # strong rows first
    n_strong = jnp.sum(strong.astype(jnp.int32))
    s_idx = jnp.where(jnp.arange(s_max, dtype=jnp.int32) < n_strong,
                      order[:s_max].astype(jnp.int32), n)

    # Strong-only neighbourhood: weak neighbours are redirected to the zero row
    # (the conv is linear in neighbour features, so this equals convolving the
    # strong-only sparse tensor).
    strong_ext = jnp.concatenate([strong, jnp.zeros((1,), jnp.bool_)])
    nbr_rows = jnp.take(nbrk, s_idx, axis=0, mode="fill", fill_value=n)   # [s_max, K3]
    nbr_rows = jnp.where(strong_ext[nbr_rows], nbr_rows, n)

    kc = k3 * c
    cout_pad = _round_up(cout, LANES)
    tile, spad = choose_tiling(s_max, kc * 2 + cout_pad * 4)
    g = gather_folded(x_feats, nbr_rows, spad)
    w_fold = jnp.pad(w_dw.reshape(kc, cout).astype(jnp.bfloat16),
                     ((0, 0), (0, cout_pad - cout)))
    b_fold = jnp.pad(b_dw.astype(jnp.float32), (0, cout_pad - cout)).reshape(1, cout_pad)

    conv = pl.pallas_call(
        _conv_bias_kernel,
        out_shape=jax.ShapeDtypeStruct((spad, cout_pad), jnp.float32),
        grid=(spad // tile,),
        in_specs=[pl.BlockSpec((tile, kc), lambda i: (i, 0)),
                  pl.BlockSpec((kc, cout_pad), lambda i: (0, 0)),
                  pl.BlockSpec((1, cout_pad), lambda i: (0, 0))],
        out_specs=pl.BlockSpec((tile, cout_pad), lambda i: (i, 0)),
        compiler_params=pltpu.CompilerParams(
            dimension_semantics=("parallel",),
            vmem_limit_bytes=_VMEM_LIMIT),
    )(g, w_fold, b_fold)[:s_max, :cout]

    # Union of disjoint coordinate sets: strong coords take dw(strong)+bias,
    # weak coords keep their original features; padded slots (s_idx == n) drop.
    out = x_feats.at[s_idx].set(conv, mode="drop")
    return out, strong


# ---------------------------------------------------------------------------
# Full sc_conv forward (jittable end-to-end)
# ---------------------------------------------------------------------------
def sc_conv_forward(coords, feats, params, *, kernel_size, stride, th):
    """x = channel_conv(x); out = Adaconv(x, th) + x; return x.
    Returns (coords, x_feats, out_feats, strong); the torch module's return
    value is x_feats (the Adaconv branch is computed then discarded)."""
    # TODO(synk): stride > 1 (Minkowski coordinate downsampling) not implemented;
    # this reproduces the stride == 1 semantics (output coords == input coords).
    assert stride == 1
    nbrk = build_neighbor_indices(coords, kernel_size)
    nbr3 = nbrk if kernel_size == 3 else build_neighbor_indices(coords, 3)

    x_feats, t, sq = channel_conv_with_gate(
        feats, params["w_cc"], params["b_cc"], nbrk)

    union_feats, strong = adaconv(coords, x_feats, t, sq,
                                  params["w_dw"], params["b_dw"], th, nbr3, nbrk)

    out_feats = union_feats + x_feats      # computed, then discarded by the reference
    return coords, x_feats, out_feats, strong


def init_params(key, in_channels, out_channels, kernel_size):
    k3 = kernel_size ** 3
    k1, k2, k3_, k4 = jax.random.split(key, 4)
    s_cc = 1.0 / ((k3 * in_channels) ** 0.5)
    s_dw = 1.0 / ((k3 * out_channels) ** 0.5)
    return {
        "w_cc": jax.random.normal(k1, (k3, in_channels, out_channels), jnp.float32) * s_cc,
        "b_cc": jax.random.normal(k2, (out_channels,), jnp.float32) * 0.1,
        "w_dw": jax.random.normal(k3_, (k3, out_channels, out_channels), jnp.float32) * s_dw,
        "b_dw": jax.random.normal(k4, (out_channels,), jnp.float32) * 0.1,
    }


# ---------------------------------------------------------------------------
# Pure-JAX references (consume the same bf16-rounded operands, f32 accumulate)
# ---------------------------------------------------------------------------
def _ref_channel_conv(feats, w, b, nbr):
    n, cin = feats.shape
    f_bf = feats.astype(jnp.bfloat16).astype(jnp.float32)
    f_ext = jnp.concatenate([f_bf, jnp.zeros((1, cin), jnp.float32)], axis=0)
    g = f_ext[nbr]                                         # [N, K3, Cin]
    w_bf = w.astype(jnp.bfloat16).astype(jnp.float32)
    return jnp.einsum("nki,kio->no", g, w_bf, precision="highest") + b[None, :]


def _ref_dw_union(x, strong, w, b, nbr):
    n, c = x.shape
    strong_ext = jnp.concatenate([strong, jnp.zeros((1,), jnp.bool_)])
    nbr_s = jnp.where(strong_ext[nbr], nbr, n)
    x_bf = x.astype(jnp.bfloat16).astype(jnp.float32)
    f_ext = jnp.concatenate([x_bf, jnp.zeros((1, c), jnp.float32)], axis=0)
    g = f_ext[nbr_s]
    w_bf = w.astype(jnp.bfloat16).astype(jnp.float32)
    conv = jnp.einsum("nki,kio->no", g, w_bf, precision="highest") + b[None, :]
    s = strong.astype(x.dtype)[:, None]
    return s * conv + (1.0 - s) * x


if __name__ == "__main__":
    key = jax.random.PRNGKey(0)
    kc_, kf, kp = jax.random.split(key, 3)

    in_channels = 16
    out_channels = 32
    kernel_size = 3
    stride = 1
    th = 0.5
    batch = 2
    pts_per_batch = 48
    grid_size = 8

    # unique sparse voxel coordinates per batch
    coords_list = []
    for b in range(batch):
        kb = jax.random.fold_in(kc_, b)
        perm = jax.random.permutation(kb, grid_size ** 3)[:pts_per_batch]
        z = (perm % grid_size).astype(jnp.int32)
        y = ((perm // grid_size) % grid_size).astype(jnp.int32)
        x = (perm // (grid_size * grid_size)).astype(jnp.int32)
        bcol = jnp.full((pts_per_batch,), b, jnp.int32)
        coords_list.append(jnp.stack([bcol, x, y, z], axis=1))
    coords = jnp.concatenate(coords_list, axis=0)          # [N, 4]
    N = coords.shape[0]

    feats = jax.random.normal(kf, (N, in_channels), jnp.float32)   # x.F
    params = init_params(kp, in_channels, out_channels, kernel_size)

    fwd = jax.jit(sc_conv_forward, static_argnames=("kernel_size", "stride", "th"))
    out_coords, x_feats, out_feats, strong = fwd(
        coords, feats, params, kernel_size=kernel_size, stride=stride, th=th)
    jax.block_until_ready((x_feats, out_feats, strong))

    assert x_feats.shape == (N, out_channels)      # module return value (`return x`)
    assert out_feats.shape == (N, out_channels)
    assert out_coords.shape == (N, 4)
    assert bool(jnp.isfinite(x_feats).all()) and bool(jnp.isfinite(out_feats).all())

    # correctness check against a pure-JAX einsum reference on the same
    # bf16-rounded operands (f32 accumulation on both sides)
    nbrk = build_neighbor_indices(coords, kernel_size)     # kernel_size == 3 => nbr3 == nbrk
    ref_x = _ref_channel_conv(feats, params["w_cc"], params["b_cc"], nbrk)
    ref_out = _ref_dw_union(x_feats, strong, params["w_dw"], params["b_dw"], nbrk) + x_feats
    np.testing.assert_allclose(np.asarray(x_feats), np.asarray(ref_x), rtol=2e-3, atol=2e-3)
    np.testing.assert_allclose(np.asarray(out_feats), np.asarray(ref_out), rtol=2e-3, atol=2e-3)

    # per-batch strong count matches int(n_b * th / 3.21)
    batch_col = np.asarray(coords[:, 0])
    strong_np = np.asarray(strong)
    for b in range(batch):
        nb = int((batch_col == b).sum())
        assert int(strong_np[batch_col == b].sum()) == int(nb * th / 3.21)

    print("KERNEL_OK")
</pallas_src>

<mosaic_0001>
module attributes {stable_mosaic.version = 11 : i64} {
  func.func @kernel(%arg0: i32, %arg1: memref<48x432xbf16, #tpu.memory_space<vmem>>, %arg2: memref<432x128xbf16, #tpu.memory_space<vmem>>, %arg3: memref<1x128xf32, #tpu.memory_space<vmem>>, %arg4: memref<48x128xf32, #tpu.memory_space<vmem>>) attributes {dimension_semantics = [#tpu.dimension_semantics<parallel>], iteration_bounds = array<i64: 2>, scalar_prefetch = 0 : i64, scratch_operands = 0 : i64, tpu.core_type = #tpu.core_type<tc>, window_params = [{transform_indices = @transform_0, window_bounds = array<i64: 48, 432>}, {pipeline_mode = #tpu.pipeline_mode<synchronous>, transform_indices = @transform_1, window_bounds = array<i64: 432, 128>}, {pipeline_mode = #tpu.pipeline_mode<synchronous>, transform_indices = @transform_2, window_bounds = array<i64: 1, 128>}, {transform_indices = @transform_3, window_bounds = array<i64: 48, 128>}]} {
    %c0 = arith.constant 0 : index
    %c0_0 = arith.constant 0 : index
    %0 = vector.load %arg1[%c0, %c0_0] : memref<48x432xbf16, #tpu.memory_space<vmem>>, vector<48x432xbf16>
    %c0_1 = arith.constant 0 : index
    %c0_2 = arith.constant 0 : index
    %1 = vector.load %arg2[%c0_1, %c0_2] : memref<432x128xbf16, #tpu.memory_space<vmem>>, vector<432x128xbf16>
    %cst = arith.constant dense<0.000000e+00> : vector<48x128xf32>
    %2 = tpu.matmul %0, %1, %cst {dimension_numbers = #tpu.dot_dimension_numbers<[1], [0], [0], [1], [0, 0, 1, 1], [], []>} : vector<48x432xbf16>, vector<432x128xbf16>, vector<48x128xf32> -> vector<48x128xf32>
    %c0_3 = arith.constant 0 : index
    %c0_4 = arith.constant 0 : index
    %3 = vector.load %arg3[%c0_3, %c0_4] : memref<1x128xf32, #tpu.memory_space<vmem>>, vector<1x128xf32>
    %4 = vector.broadcast %3 : vector<1x128xf32> to vector<48x128xf32>
    %5 = arith.addf %2, %4 : vector<48x128xf32>
    %cst_5 = arith.constant dense<0.000000e+00> : vector<48xf32>
    %6 = vector.multi_reduction <add>, %5, %cst_5 [1] : vector<48x128xf32> to vector<48xf32>
    %7 = vector.shape_cast %6 : vector<48xf32> to vector<48x1xf32>
    %8 = arith.mulf %5, %5 : vector<48x128xf32>
    %cst_6 = arith.constant dense<0.000000e+00> : vector<48xf32>
    %9 = vector.multi_reduction <add>, %8, %cst_6 [1] : vector<48x128xf32> to vector<48xf32>
    %10 = vector.shape_cast %9 : vector<48xf32> to vector<48x1xf32>
    %11 = tpu.iota {dimensions = array<i32: 1>} : vector<48x128xi32>
    %c32_i32 = arith.constant 32 : i32
    %12 = vector.broadcast %c32_i32 : i32 to vector<48x128xi32>
    %13 = arith.cmpi eq, %11, %12 : vector<48x128xi32>
    %c33_i32 = arith.constant 33 : i32
    %14 = vector.broadcast %c33_i32 : i32 to vector<48x128xi32>
    %15 = arith.cmpi eq, %11, %14 : vector<48x128xi32>
    %16 = vector.shape_cast %10 : vector<48x1xf32> to vector<48x1xf32>
    %17 = vector.broadcast %16 : vector<48x1xf32> to vector<48x128xf32>
    %18 = arith.select %15, %17, %5 : vector<48x128xi1>, vector<48x128xf32>
    %19 = vector.shape_cast %7 : vector<48x1xf32> to vector<48x1xf32>
    %20 = vector.broadcast %19 : vector<48x1xf32> to vector<48x128xf32>
    %21 = arith.select %13, %20, %18 : vector<48x128xi1>, vector<48x128xf32>
    %c0_7 = arith.constant 0 : index
    %c0_8 = arith.constant 0 : index
    %22 = vector.load %arg4[%c0_7, %c0_8] : memref<48x128xf32, #tpu.memory_space<vmem>>, vector<48x128xf32>
    tpu.vector_store %arg4[%c0_7, %c0_8], %21 {strides = array<i32>} : memref<48x128xf32, #tpu.memory_space<vmem>>, vector<48x128xf32>,
    return
  }
  func.func @transform_0(%arg0: i32) -> (i32, i32) {
    %c0_i32 = arith.constant 0 : i32
    %c0_i32_0 = arith.constant 0 : i32
    return %arg0, %c0_i32 : i32, i32
  }
  func.func @transform_1(%arg0: i32) -> (i32, i32) {
    %c0_i32 = arith.constant 0 : i32
    %c0_i32_0 = arith.constant 0 : i32
    %c0_i32_1 = arith.constant 0 : i32
    return %c0_i32, %c0_i32_0 : i32, i32
  }
  func.func @transform_2(%arg0: i32) -> (i32, i32) {
    %c0_i32 = arith.constant 0 : i32
    %c0_i32_0 = arith.constant 0 : i32
    %c0_i32_1 = arith.constant 0 : i32
    return %c0_i32, %c0_i32_0 : i32, i32
  }
  func.func @transform_3(%arg0: i32) -> (i32, i32) {
    %c0_i32 = arith.constant 0 : i32
    %c0_i32_0 = arith.constant 0 : i32
    return %arg0, %c0_i32 : i32, i32
  }
}

module attributes {stable_mosaic.version = 11 : i64} {
  func.func @_conv_bias_kernel(%arg0: i32, %arg1: memref<16x864xbf16, #tpu.memory_space<vmem>>, %arg2: memref<864x128xbf16, #tpu.memory_space<vmem>>, %arg3: memref<1x128xf32, #tpu.memory_space<vmem>>, %arg4: memref<16x128xf32, #tpu.memory_space<vmem>>) attributes {dimension_semantics = [#tpu.dimension_semantics<parallel>], iteration_bounds = array<i64: 2>, scalar_prefetch = 0 : i64, scratch_operands = 0 : i64, tpu.core_type = #tpu.core_type<tc>, window_params = [{transform_indices = @transform_0, window_bounds = array<i64: 16, 864>}, {pipeline_mode = #tpu.pipeline_mode<synchronous>, transform_indices = @transform_1, window_bounds = array<i64: 864, 128>}, {pipeline_mode = #tpu.pipeline_mode<synchronous>, transform_indices = @transform_2, window_bounds = array<i64: 1, 128>}, {transform_indices = @transform_3, window_bounds = array<i64: 16, 128>}]} {
    %c0 = arith.constant 0 : index
    %c0_0 = arith.constant 0 : index
    %0 = vector.load %arg1[%c0, %c0_0] : memref<16x864xbf16, #tpu.memory_space<vmem>>, vector<16x864xbf16>
    %c0_1 = arith.constant 0 : index
    %c0_2 = arith.constant 0 : index
    %1 = vector.load %arg2[%c0_1, %c0_2] : memref<864x128xbf16, #tpu.memory_space<vmem>>, vector<864x128xbf16>
    %cst = arith.constant dense<0.000000e+00> : vector<16x128xf32>
    %2 = tpu.matmul %0, %1, %cst {dimension_numbers = #tpu.dot_dimension_numbers<[1], [0], [0], [1], [0, 0, 1, 1], [], []>} : vector<16x864xbf16>, vector<864x128xbf16>, vector<16x128xf32> -> vector<16x128xf32>
    %c0_3 = arith.constant 0 : index
    %c0_4 = arith.constant 0 : index
    %3 = vector.load %arg3[%c0_3, %c0_4] : memref<1x128xf32, #tpu.memory_space<vmem>>, vector<1x128xf32>
    %4 = vector.broadcast %3 : vector<1x128xf32> to vector<16x128xf32>
    %5 = arith.addf %2, %4 : vector<16x128xf32>
    %c0_5 = arith.constant 0 : index
    %c0_6 = arith.constant 0 : index
    %6 = vector.load %arg4[%c0_5, %c0_6] : memref<16x128xf32, #tpu.memory_space<vmem>>, vector<16x128xf32>
    tpu.vector_store %arg4[%c0_5, %c0_6], %5 {strides = array<i32>} : memref<16x128xf32, #tpu.memory_space<vmem>>, vector<16x128xf32>,
    return
  }
  func.func @transform_0(%arg0: i32) -> (i32, i32) {
    %c0_i32 = arith.constant 0 : i32
    %c0_i32_0 = arith.constant 0 : i32
    return %arg0, %c0_i32 : i32, i32
  }
  func.func @transform_1(%arg0: i32) -> (i32, i32) {
    %c0_i32 = arith.constant 0 : i32
    %c0_i32_0 = arith.constant 0 : i32
    %c0_i32_1 = arith.constant 0 : i32
    return %c0_i32, %c0_i32_0 : i32, i32
  }
  func.func @transform_2(%arg0: i32) -> (i32, i32) {
    %c0_i32 = arith.constant 0 : i32
    %c0_i32_0 = arith.constant 0 : i32
    %c0_i32_1 = arith.constant 0 : i32
    return %c0_i32, %c0_i32_0 : i32, i32
  }
  func.func @transform_3(%arg0: i32) -> (i32, i32) {
    %c0_i32 = arith.constant 0 : i32
    %c0_i32_0 = arith.constant 0 : i32
    return %arg0, %c0_i32 : i32, i32
  }
}

</mosaic_0001>

<llo_original>
// kernel: custom-call
$region0: #{custom-call}
  %s0 = inlined_call_operand.vmem [shape: u32[96,27], index: 0, kind: output, shape index: {}]

// kernel: squeeze.18
$region0: #{squeeze.18}
  %s0 = inlined_call_operand.vmem [shape: s32[2592], index: 0, kind: input, shape index: {}]
  %s1 = inlined_call_operand.vmem [shape: s32[96,27], index: 1, kind: output, shape index: {}]
  %v2 = vld [vmem:[%s0] sm:$0x1]
  %vm3 = vcmask 220160
  %4 = vst.msk [vmem:[%s1] sm:$0x1] %vm3, %v2
  %s5 = scalar_lea.vmem %s0, 4
  %v6 = vld [vmem:[%s5] sm:$0x1]
  %7 = vrot.lane.b32.xlu0 %v6, 127
  %v8 = vpop.permute.xlu0 %7
  %vm9 = vcmask 220160
  %s10 = scalar_lea.vmem %s1, 19
  %11 = vst.msk [vmem:[%s10] sm:$0x1] %vm9, %v8
  %s12 = scalar_lea.vmem %s0, 8
  %v13 = vld [vmem:[%s12] sm:$0x1]
  %14 = vrot.lane.b32.xlu0 %v13, 126
  %v15 = vpop.permute.xlu0 %14
  %vm16 = vcmask 220160
  %s17 = scalar_lea.vmem %s1, 38
  %18 = vst.msk [vmem:[%s17] sm:$0x1] %vm16, %v15
  %s19 = scalar_lea.vmem %s0, 12
  %v20 = vld [vmem:[%s19] sm:$0x1]
  %21 = vrot.lane.b32.xlu0 %v20, 125
  %v22 = vpop.permute.xlu0 %21
  %vm23 = vcmask 220160
  %s24 = scalar_lea.vmem %s1, 57
  %25 = vst.msk [vmem:[%s24] sm:$0x1] %vm23, %v22
  %s26 = scalar_lea.vmem %s0, 16
  %v27 = vld [vmem:[%s26] sm:$0x1]
  %28 = vrot.lane.b32.xlu0 %v27, 124
  %v29 = vpop.permute.xlu0 %28
  %vm30 = vcmask 220160
  %s31 = scalar_lea.vmem %s1, 76
  %32 = vst.msk [vmem:[%s31] sm:$0x1] %vm30, %v29
  %s33 = scalar_lea.vmem %s0, 20
  %v34 = vld [vmem:[%s33] sm:$0x1]
  %35 = vrot.lane.b32.xlu0 %v34, 123
  %v36 = vpop.permute.xlu0 %35
  %vm37 = vcmask 220160
  %s38 = scalar_lea.vmem %s1, 95
  %39 = vst.msk [vmem:[%s38] sm:$0x1] %vm37, %v36
  %s40 = scalar_lea.vmem %s0, 1
  %v41 = vld [vmem:[%s40] sm:$0x1]
  %42 = vrot.lane.b32.xlu0 %v41, 121
  %v43 = vpop.permute.xlu0 %42
  %vm44 = vcmask 220160
  %s45 = scalar_lea.vmem %s1, 5
  %46 = vst.msk [vmem:[%s45] sm:$0x1] %vm44, %v43
  %s47 = scalar_lea.vmem %s0, 5
  %v48 = vld [vmem:[%s47] sm:$0x1]
  %49 = vrot.lane.b32.xlu0 %v48, 120
  %v50 = vpop.permute.xlu0 %49
  %vm51 = vcmask 220160
  %s52 = scalar_lea.vmem %s1, 24
  %53 = vst.msk [vmem:[%s52] sm:$0x1] %vm51, %v50
  %s54 = scalar_lea.vmem %s0, 9
  %v55 = vld [vmem:[%s54] sm:$0x1]
  %56 = vrot.lane.b32.xlu0 %v55, 119
  %v57 = vpop.permute.xlu0 %56
  %vm58 = vcmask 220160
  %s59 = scalar_lea.vmem %s1, 43
  %60 = vst.msk [vmem:[%s59] sm:$0x1] %vm58, %v57
  %s61 = scalar_lea.vmem %s0, 13
  %v62 = vld [vmem:[%s61] sm:$0x1]
  %63 = vrot.lane.b32.xlu0 %v62, 118
  %v64 = vpop.permute.xlu0 %63
  %vm65 = vcmask 220160
  %s66 = scalar_lea.vmem %s1, 62
  %67 = vst.msk [vmem:[%s66] sm:$0x1] %vm65, %v64
  %s68 = scalar_lea.vmem %s0, 17
  %v69 = vld [vmem:[%s68] sm:$0x1]
  %70 = vrot.lane.b32.xlu0 %v69, 117
  %v71 = vpop.permute.xlu0 %70
  %vm72 = vcmask 220160
  %s73 = scalar_lea.vmem %s1, 81
  %74 = vst.msk [vmem:[%s73] sm:$0x1] %vm72, %v71
  %s75 = scalar_lea.vmem %s0, 2
  %v76 = vld [vmem:[%s75] sm:$0x1]
  %77 = vrot.lane.b32.xlu0 %v76, 114
  %v78 = vpop.permute.xlu0 %77
  %vm79 = vcmask 220160
  %s80 = scalar_lea.vmem %s1, 10
  %81 = vst.msk [vmem:[%s80] sm:$0x1] %vm79, %v78
  %s82 = scalar_lea.vmem %s0, 6
  %v83 = vld [vmem:[%s82] sm:$0x1]
  %84 = vrot.lane.b32.xlu0 %v83, 113
  %v85 = vpop.permute.xlu0 %84
  %vm86 = vcmask 220160
  %s87 = scalar_lea.vmem %s1, 29
  %88 = vst.msk [vmem:[%s87] sm:$0x1] %vm86, %v85
  %s89 = scalar_lea.vmem %s0, 10
  %v90 = vld [vmem:[%s89] sm:$0x1]
  %91 = vrot.lane.b32.xlu0 %v90, 112
  %v92 = vpop.permute.xlu0 %91
  %vm93 = vcmask 220160
  %s94 = scalar_lea.vmem %s1, 48
  %95 = vst.msk [vmem:[%s94] sm:$0x1] %vm93, %v92
  %s96 = scalar_lea.vmem %s0, 14
  %v97 = vld [vmem:[%s96] sm:$0x1]
  %98 = vrot.lane.b32.xlu0 %v97, 111
  %v99 = vpop.permute.xlu0 %98
  %vm100 = vcmask 220160
  %s101 = scalar_lea.vmem %s1, 67
  %102 = vst.msk [vmem:[%s101] sm:$0x1] %vm100, %v99
  %s103 = scalar_lea.vmem %s0, 18
  %v104 = vld [vmem:[%s103] sm:$0x1]
  %105 = vrot.lane.b32.xlu0 %v104, 110
  %v106 = vpop.permute.xlu0 %105
  %vm107 = vcmask 220160
  %s108 = scalar_lea.vmem %s1, 86
  %109 = vst.msk [vmem:[%s108] sm:$0x1] %vm107, %v106
  %s110 = scalar_lea.vmem %s0, 3
  %v111 = vld [vmem:[%s110] sm:$0x1]
  %112 = vrot.lane.b32.xlu0 %v111, 107
  %v113 = vpop.permute.xlu0 %112
  %vm114 = vcmask 220160
  %s115 = scalar_lea.vmem %s1, 15
  %116 = vst.msk [vmem:[%s115] sm:$0x1] %vm114, %v113
  %s117 = scalar_lea.vmem %s0, 7
  %v118 = vld [vmem:[%s117] sm:$0x1]
  %119 = vrot.lane.b32.xlu0 %v118, 106
  %v120 = vpop.permute.xlu0 %119
  %vm121 = vcmask 220160
  %s122 = scalar_lea.vmem %s1, 34
  %123 = vst.msk [vmem:[%s122] sm:$0x1] %vm121, %v120
  %s124 = scalar_lea.vmem %s0, 11
  %v125 = vld [vmem:[%s124] sm:$0x1]
  %126 = vrot.lane.b32.xlu0 %v125, 105
  %v127 = vpop.permute.xlu0 %126
  %vm128 = vcmask 220160
  %s129 = scalar_lea.vmem %s1, 53
  %130 = vst.msk [vmem:[%s129] sm:$0x1] %vm128, %v127
  %s131 = scalar_lea.vmem %s0, 15
  %v132 = vld [vmem:[%s131] sm:$0x1]
  %133 = vrot.lane.b32.xlu0 %v132, 104
  %v134 = vpop.permute.xlu0 %133
  %vm135 = vcmask 220160
  %s136 = scalar_lea.vmem %s1, 72
  %137 = vst.msk [vmem:[%s136] sm:$0x1] %vm135, %v134
  %s138 = scalar_lea.vmem %s0, 19
  %v139 = vld [vmem:[%s138] sm:$0x1]
  %140 = vrot.lane.b32.xlu0 %v139, 103
  %v141 = vpop.permute.xlu0 %140
  %vm142 = vcmask 220160
  %s143 = scalar_lea.vmem %s1, 91
  %144 = vst.msk [vmem:[%s143] sm:$0x1] %vm142, %v141
  %v145 = vld [vmem:[%s0] sm:$0x1]
  %146 = vrot.lane.b32.xlu0 %v145, 101
  %v147 = vpop.permute.xlu0 %146
  %vm148 = vcmask 220160
  %s149 = scalar_lea.vmem %s1, 1
  %150 = vst.msk [vmem:[%s149] sm:$0x1] %vm148, %v147
  %s151 = scalar_lea.vmem %s0, 4
  %v152 = vld [vmem:[%s151] sm:$0x1]
  %153 = vrot.lane.b32.xlu0 %v152, 100
  %v154 = vpop.permute.xlu0 %153
  %vm155 = vcmask 220160
  %s156 = scalar_lea.vmem %s1, 20
  %157 = vst.msk [vmem:[%s156] sm:$0x1] %vm155, %v154
  %s158 = scalar_lea.vmem %s0, 8
  %v159 = vld [vmem:[%s158] sm:$0x1]
  %160 = vrot.lane.b32.xlu0 %v159, 99
  %v161 = vpop.permute.xlu0 %160
  %vm162 = vcmask 220160
  %s163 = scalar_lea.vmem %s1, 39
  %164 = vst.msk [vmem:[%s163] sm:$0x1] %vm162, %v161
  %s165 = scalar_lea.vmem %s0, 12
  %v166 = vld [vmem:[%s165] sm:$0x1]
  %167 = vrot.lane.b32.xlu0 %v166, 98
  %v168 = vpop.permute.xlu0 %167
  %vm169 = vcmask 220160
  %s170 = scalar_lea.vmem %s1, 58
  %171 = vst.msk [vmem:[%s170] sm:$0x1] %vm169, %v168
  %s172 = scalar_lea.vmem %s0, 16
  %v173 = vld [vmem:[%s172] sm:$0x1]
  %174 = vrot.lane.b32.xlu0 %v173, 97
  %v175 = vpop.permute.xlu0 %174
  %vm176 = vcmask 220160
  %s177 = scalar_lea.vmem %s1, 77
  %178 = vst.msk [vmem:[%s177] sm:$0x1] %vm176, %v175
  %s179 = scalar_lea.vmem %s0, 1
  %v180 = vld [vmem:[%s179] sm:$0x1]
  %181 = vrot.lane.b32.xlu0 %v180, 94
  %v182 = vpop.permute.xlu0 %181
  %vm183 = vcmask 220160
  %s184 = scalar_lea.vmem %s1, 6
  %185 = vst.msk [vmem:[%s184] sm:$0x1] %vm183, %v182
  %s186 = scalar_lea.vmem %s0, 5
  %v187 = vld [vmem:[%s186] sm:$0x1]
  %188 = vrot.lane.b32.xlu0 %v187, 93
  %v189 = vpop.permute.xlu0 %188
  %vm190 = vcmask 220160
  %s191 = scalar_lea.vmem %s1, 25
  %192 = vst.msk [vmem:[%s191] sm:$0x1] %vm190, %v189
  %s193 = scalar_lea.vmem %s0, 9
  %v194 = vld [vmem:[%s193] sm:$0x1]
  %195 = vrot.lane.b32.xlu0 %v194, 92
  %v196 = vpop.permute.xlu0 %195
  %vm197 = vcmask 220160
  %s198 = scalar_lea.vmem %s1, 44
  %199 = vst.msk [vmem:[%s198] sm:$0x1] %vm197, %v196
  %s200 = scalar_lea.vmem %s0, 13
  %v201 = vld [vmem:[%s200] sm:$0x1]
  %202 = vrot.lane.b32.xlu0 %v201, 91
  %v203 = vpop.permute.xlu0 %202
  %vm204 = vcmask 220160
  %s205 = scalar_lea.vmem %s1, 63
  %206 = vst.msk [vmem:[%s205] sm:$0x1] %vm204, %v203
  %s207 = scalar_lea.vmem %s0, 17
  %v208 = vld [vmem:[%s207] sm:$0x1]
  %209 = vrot.lane.b32.xlu0 %v208, 90
  %v210 = vpop.permute.xlu0 %209
  %vm211 = vcmask 220160
  %s212 = scalar_lea.vmem %s1, 82
  %213 = vst.msk [vmem:[%s212] sm:$0x1] %vm211, %v210
  %s214 = scalar_lea.vmem %s0, 2
  %v215 = vld [vmem:[%s214] sm:$0x1]
  %216 = vrot.lane.b32.xlu0 %v215, 87
  %v217 = vpop.permute.xlu0 %216
  %vm218 = vcmask 220160
  %s219 = scalar_lea.vmem %s1, 11
  %220 = vst.msk [vmem:[%s219] sm:$0x1] %vm218, %v217
  %s221 = scalar_lea.vmem %s0, 6
  %v222 = vld [vmem:[%s221] sm:$0x1]
  %223 = vrot.lane.b32.xlu0 %v222, 86
  %v224 = vpop.permute.xlu0 %223
  %vm225 = vcmask 220160
  %s226 = scalar_lea.vmem %s1, 30
  %227 = vst.msk [vmem:[%s226] sm:$0x1] %vm225, %v224
  %s228 = scalar_lea.vmem %s0, 10
  %v229 = vld [vmem:[%s228] sm:$0x1]
  %230 = vrot.lane.b32.xlu0 %v229, 85
  %v231 = vpop.permute.xlu0 %230
  %vm232 = vcmask 220160
  %s233 = scalar_lea.vmem %s1, 49
  %234 = vst.msk [vmem:[%s233] sm:$0x1] %vm232, %v231
  %s235 = scalar_lea.vmem %s0, 14
  %v236 = vld [vmem:[%s235] sm:$0x1]
  %237 = vrot.lane.b32.xlu0 %v236, 84
  %v238 = vpop.permute.xlu0 %237
  %vm239 = vcmask 220160
  %s240 = scalar_lea.vmem %s1, 68
  %241 = vst.msk [vmem:[%s240] sm:$0x1] %vm239, %v238
  %s242 = scalar_lea.vmem %s0, 18
  %v243 = vld [vmem:[%s242] sm:$0x1]
  %244 = vrot.lane.b32.xlu0 %v243, 83
  %v245 = vpop.permute.xlu0 %244
  %vm246 = vcmask 220160
  %s247 = scalar_lea.vmem %s1, 87
  %248 = vst.msk [vmem:[%s247] sm:$0x1] %vm246, %v245
  %s249 = scalar_lea.vmem %s0, 3
  %v250 = vld [vmem:[%s249] sm:$0x1]
  %251 = vrot.lane.b32.xlu0 %v250, 80
  %v252 = vpop.permute.xlu0 %251
  %vm253 = vcmask 220160
  %s254 = scalar_lea.vmem %s1, 16
  %255 = vst.msk [vmem:[%s254] sm:$0x1] %vm253, %v252
  %s256 = scalar_lea.vmem %s0, 7
  %v257 = vld [vmem:[%s256] sm:$0x1]
  %258 = vrot.lane.b32.xlu0 %v257, 79
  %v259 = vpop.permute.xlu0 %258
  %vm260 = vcmask 220160
  %s261 = scalar_lea.vmem %s1, 35
  %262 = vst.msk [vmem:[%s261] sm:$0x1] %vm260, %v259
  %s263 = scalar_lea.vmem %s0, 11
  %v264 = vld [vmem:[%s263] sm:$0x1]
  %265 = vrot.lane.b32.xlu0 %v264, 78
  %v266 = vpop.permute.xlu0 %265
  %vm267 = vcmask 220160
  %s268 = scalar_lea.vmem %s1, 54
  %269 = vst.msk [vmem:[%s268] sm:$0x1] %vm267, %v266
  %s270 = scalar_lea.vmem %s0, 15
  %v271 = vld [vmem:[%s270] sm:$0x1]
  %272 = vrot.lane.b32.xlu0 %v271, 77
  %v273 = vpop.permute.xlu0 %272
  %vm274 = vcmask 220160
  %s275 = scalar_lea.vmem %s1, 73
  %276 = vst.msk [vmem:[%s275] sm:$0x1] %vm274, %v273
  %s277 = scalar_lea.vmem %s0, 19
  %v278 = vld [vmem:[%s277] sm:$0x1]
  %279 = vrot.lane.b32.xlu0 %v278, 76
  %v280 = vpop.permute.xlu0 %279
  %vm281 = vcmask 220160
  %s282 = scalar_lea.vmem %s1, 92
  %283 = vst.msk [vmem:[%s282] sm:$0x1] %vm281, %v280
  %v284 = vld [vmem:[%s0] sm:$0x1]
  %285 = vrot.lane.b32.xlu0 %v284, 74
  %v286 = vpop.permute.xlu0 %285
  %vm287 = vcmask 220160
  %s288 = scalar_lea.vmem %s1, 2
  %289 = vst.msk [vmem:[%s288] sm:$0x1] %vm287, %v286
  %s290 = scalar_lea.vmem %s0, 4
  %v291 = vld [vmem:[%s290] sm:$0x1]
  %292 = vrot.lane.b32.xlu0 %v291, 73
  %v293 = vpop.permute.xlu0 %292
  %vm294 = vcmask 220160
  %s295 = scalar_lea.vmem %s1, 21
  %296 = vst.msk [vmem:[%s295] sm:$0x1] %vm294, %v293
  %s297 = scalar_lea.vmem %s0, 8
  %v298 = vld [vmem:[%s297] sm:$0x1]
  %299 = vrot.lane.b32.xlu0 %v298, 72
  %v300 = vpop.permute.xlu0 %299
  %vm301 = vcmask 220160
  %s302 = scalar_lea.vmem %s1, 40
  %303 = vst.msk [vmem:[%s302] sm:$0x1] %vm301, %v300
  %s304 = scalar_lea.vmem %s0, 12
  %v305 = vld [vmem:[%s304] sm:$0x1]
  %306 = vrot.lane.b32.xlu0 %v305, 71
  %v307 = vpop.permute.xlu0 %306
  %vm308 = vcmask 220160
  %s309 = scalar_lea.vmem %s1, 59
  %310 = vst.msk [vmem:[%s309] sm:$0x1] %vm308, %v307
  %s311 = scalar_lea.vmem %s0, 16
  %v312 = vld [vmem:[%s311] sm:$0x1]
  %313 = vrot.lane.b32.xlu0 %v312, 70
  %v314 = vpop.permute.xlu0 %313
  %vm315 = vcmask 220160
  %s316 = scalar_lea.vmem %s1, 78
  %317 = vst.msk [vmem:[%s316] sm:$0x1] %vm315, %v314
  %s318 = scalar_lea.vmem %s0, 1
  %v319 = vld [vmem:[%s318] sm:$0x1]
  %320 = vrot.lane.b32.xlu0 %v319, 67
  %v321 = vpop.permute.xlu0 %320
  %vm322 = vcmask 220160
  %s323 = scalar_lea.vmem %s1, 7
  %324 = vst.msk [vmem:[%s323] sm:$0x1] %vm322, %v321
  %s325 = scalar_lea.vmem %s0, 5
  %v326 = vld [vmem:[%s325] sm:$0x1]
  %327 = vrot.lane.b32.xlu0 %v326, 66
  %v328 = vpop.permute.xlu0 %327
  %vm329 = vcmask 220160
  %s330 = scalar_lea.vmem %s1, 26
  %331 = vst.msk [vmem:[%s330] sm:$0x1] %vm329, %v328
  %s332 = scalar_lea.vmem %s0, 9
  %v333 = vld [vmem:[%s332] sm:$0x1]
  %334 = vrot.lane.b32.xlu0 %v333, 65
  %v335 = vpop.permute.xlu0 %334
  %vm336 = vcmask 220160
  %s337 = scalar_lea.vmem %s1, 45
  %338 = vst.msk [vmem:[%s337] sm:$0x1] %vm336, %v335
  %s339 = scalar_lea.vmem %s0, 13
  %v340 = vld [vmem:[%s339] sm:$0x1]
  %341 = vrot.lane.b32.xlu0 %v340, 64
  %v342 = vpop.permute.xlu0 %341
  %vm343 = vcmask 220160
  %s344 = scalar_lea.vmem %s1, 64
  %345 = vst.msk [vmem:[%s344] sm:$0x1] %vm343, %v342
  %s346 = scalar_lea.vmem %s0, 17
  %v347 = vld [vmem:[%s346] sm:$0x1]
  %348 = vrot.lane.b32.xlu0 %v347, 63
  %v349 = vpop.permute.xlu0 %348
  %vm350 = vcmask 220160
  %s351 = scalar_lea.vmem %s1, 83
  %352 = vst.msk [vmem:[%s351] sm:$0x1] %vm350, %v349
  %s353 = scalar_lea.vmem %s0, 2
  %v354 = vld [vmem:[%s353] sm:$0x1]
  %355 = vrot.lane.b32.xlu0 %v354, 60
  %v356 = vpop.permute.xlu0 %355
  %vm357 = vcmask 220160
  %s358 = scalar_lea.vmem %s1, 12
  %359 = vst.msk [vmem:[%s358] sm:$0x1] %vm357, %v356
  %s360 = scalar_lea.vmem %s0, 6
  %v361 = vld [vmem:[%s360] sm:$0x1]
  %362 = vrot.lane.b32.xlu0 %v361, 59
  %v363 = vpop.permute.xlu0 %362
  %vm364 = vcmask 220160
  %s365 = scalar_lea.vmem %s1, 31
  %366 = vst.msk [vmem:[%s365] sm:$0x1] %vm364, %v363
  %s367 = scalar_lea.vmem %s0, 10
  %v368 = vld [vmem:[%s367] sm:$0x1]
  %369 = vrot.lane.b32.xlu0 %v368, 58
  %v370 = vpop.permute.xlu0 %369
  %vm371 = vcmask 220160
  %s372 = scalar_lea.vmem %s1, 50
  %373 = vst.msk [vmem:[%s372] sm:$0x1] %vm371, %v370
  %s374 = scalar_lea.vmem %s0, 14
  %v375 = vld [vmem:[%s374] sm:$0x1]
  %376 = vrot.lane.b32.xlu0 %v375, 57
  %v377 = vpop.permute.xlu0 %376
  %vm378 = vcmask 220160
  %s379 = scalar_lea.vmem %s1, 69
  %380 = vst.msk [vmem:[%s379] sm:$0x1] %vm378, %v377
  %s381 = scalar_lea.vmem %s0, 18
  %v382 = vld [vmem:[%s381] sm:$0x1]
  %383 = vrot.lane.b32.xlu0 %v382, 56
  %v384 = vpop.permute.xlu0 %383
  %vm385 = vcmask 220160
  %s386 = scalar_lea.vmem %s1, 88
  %387 = vst.msk [vmem:[%s386] sm:$0x1] %vm385, %v384
  %s388 = scalar_lea.vmem %s0, 3
  %v389 = vld [vmem:[%s388] sm:$0x1]
  %390 = vrot.lane.b32.xlu0 %v389, 53
  %v391 = vpop.permute.xlu0 %390
  %vm392 = vcmask 220160
  %s393 = scalar_lea.vmem %s1, 17
  %394 = vst.msk [vmem:[%s393] sm:$0x1] %vm392, %v391
  %s395 = scalar_lea.vmem %s0, 7
  %v396 = vld [vmem:[%s395] sm:$0x1]
  %397 = vrot.lane.b32.xlu0 %v396, 52
  %v398 = vpop.permute.xlu0 %397
  %vm399 = vcmask 220160
  %s400 = scalar_lea.vmem %s1, 36
  %401 = vst.msk [vmem:[%s400] sm:$0x1] %vm399, %v398
  %s402 = scalar_lea.vmem %s0, 11
  %v403 = vld [vmem:[%s402] sm:$0x1]
  %404 = vrot.lane.b32.xlu0 %v403, 51
  %v405 = vpop.permute.xlu0 %404
  %vm406 = vcmask 220160
  %s407 = scalar_lea.vmem %s1, 55
  %408 = vst.msk [vmem:[%s407] sm:$0x1] %vm406, %v405
  %s409 = scalar_lea.vmem %s0, 15
  %v410 = vld [vmem:[%s409] sm:$0x1]
  %411 = vrot.lane.b32.xlu0 %v410, 50
  %v412 = vpop.permute.xlu0 %411
  %vm413 = vcmask 220160
  %s414 = scalar_lea.vmem %s1, 74
  %415 = vst.msk [vmem:[%s414] sm:$0x1] %vm413, %v412
  %s416 = scalar_lea.vmem %s0, 19
  %v417 = vld [vmem:[%s416] sm:$0x1]
  %418 = vrot.lane.b32.xlu0 %v417, 49
  %v419 = vpop.permute.xlu0 %418
  %vm420 = vcmask 220160
  %s421 = scalar_lea.vmem %s1, 93
  %422 = vst.msk [vmem:[%s421] sm:$0x1] %vm420, %v419
  %v423 = vld [vmem:[%s0] sm:$0x1]
  %424 = vrot.lane.b32.xlu0 %v423, 47
  %v425 = vpop.permute.xlu0 %424
  %vm426 = vcmask 220160
  %s427 = scalar_lea.vmem %s1, 3
  %428 = vst.msk [vmem:[%s427] sm:$0x1] %vm426, %v425
  %s429 = scalar_lea.vmem %s0, 4
  %v430 = vld [vmem:[%s429] sm:$0x1]
  %431 = vrot.lane.b32.xlu0 %v430, 46
  %v432 = vpop.permute.xlu0 %431
  %vm433 = vcmask 220160
  %s434 = scalar_lea.vmem %s1, 22
  %435 = vst.msk [vmem:[%s434] sm:$0x1] %vm433, %v432
  %s436 = scalar_lea.vmem %s0, 8
  %v437 = vld [vmem:[%s436] sm:$0x1]
  %438 = vrot.lane.b32.xlu0 %v437, 45
  %v439 = vpop.permute.xlu0 %438
  %vm440 = vcmask 220160
  %s441 = scalar_lea.vmem %s1, 41
  %442 = vst.msk [vmem:[%s441] sm:$0x1] %vm440, %v439
  %s443 = scalar_lea.vmem %s0, 12
  %v444 = vld [vmem:[%s443] sm:$0x1]
  %445 = vrot.lane.b32.xlu0 %v444, 44
  %v446 = vpop.permute.xlu0 %445
  %vm447 = vcmask 220160
  %s448 = scalar_lea.vmem %s1, 60
  %449 = vst.msk [vmem:[%s448] sm:$0x1] %vm447, %v446
  %s450 = scalar_lea.vmem %s0, 16
  %v451 = vld [vmem:[%s450] sm:$0x1]
  %452 = vrot.lane.b32.xlu0 %v451, 43
  %v453 = vpop.permute.xlu0 %452
  %vm454 = vcmask 220160
  %s455 = scalar_lea.vmem %s1, 79
  %456 = vst.msk [vmem:[%s455] sm:$0x1] %vm454, %v453
  %s457 = scalar_lea.vmem %s0, 1
  %v458 = vld [vmem:[%s457] sm:$0x1]
  %459 = vrot.lane.b32.xlu0 %v458, 40
  %v460 = vpop.permute.xlu0 %459
  %vm461 = vcmask 220160
  %s462 = scalar_lea.vmem %s1, 8
  %463 = vst.msk [vmem:[%s462] sm:$0x1] %vm461, %v460
  %s464 = scalar_lea.vmem %s0, 5
  %v465 = vld [vmem:[%s464] sm:$0x1]
  %466 = vrot.lane.b32.xlu0 %v465, 39
  %v467 = vpop.permute.xlu0 %466
  %vm468 = vcmask 220160
  %s469 = scalar_lea.vmem %s1, 27
  %470 = vst.msk [vmem:[%s469] sm:$0x1] %vm468, %v467
  %s471 = scalar_lea.vmem %s0, 9
  %v472 = vld [vmem:[%s471] sm:$0x1]
  %473 = vrot.lane.b32.xlu0 %v472, 38
  %v474 = vpop.permute.xlu0 %473
  %vm475 = vcmask 220160
  %s476 = scalar_lea.vmem %s1, 46
  %477 = vst.msk [vmem:[%s476] sm:$0x1] %vm475, %v474
  %s478 = scalar_lea.vmem %s0, 13
  %v479 = vld [vmem:[%s478] sm:$0x1]
  %480 = vrot.lane.b32.xlu0 %v479, 37
  %v481 = vpop.permute.xlu0 %480
  %vm482 = vcmask 220160
  %s483 = scalar_lea.vmem %s1, 65
  %484 = vst.msk [vmem:[%s483] sm:$0x1] %vm482, %v481
  %s485 = scalar_lea.vmem %s0, 17
  %v486 = vld [vmem:[%s485] sm:$0x1]
  %487 = vrot.lane.b32.xlu0 %v486, 36
  %v488 = vpop.permute.xlu0 %487
  %vm489 = vcmask 220160
  %s490 = scalar_lea.vmem %s1, 84
  %491 = vst.msk [vmem:[%s490] sm:$0x1] %vm489, %v488
  %s492 = scalar_lea.vmem %s0, 2
  %v493 = vld [vmem:[%s492] sm:$0x1]
  %494 = vrot.lane.b32.xlu0 %v493, 33
  %v495 = vpop.permute.xlu0 %494
  %vm496 = vcmask 220160
  %s497 = scalar_lea.vmem %s1, 13
  %498 = vst.msk [vmem:[%s497] sm:$0x1] %vm496, %v495
  %s499 = scalar_lea.vmem %s0, 6
  %v500 = vld [vmem:[%s499] sm:$0x1]
  %501 = vrot.lane.b32.xlu0 %v500, 32
  %v502 = vpop.permute.xlu0 %501
  %vm503 = vcmask 220160
  %s504 = scalar_lea.vmem %s1, 32
  %505 = vst.msk [vmem:[%s504] sm:$0x1] %vm503, %v502
  %s506 = scalar_lea.vmem %s0, 10
  %v507 = vld [vmem:[%s506] sm:$0x1]
  %508 = vrot.lane.b32.xlu0 %v507, 31
  %v509 = vpop.permute.xlu0 %508
  %vm510 = vcmask 220160
  %s511 = scalar_lea.vmem %s1, 51
  %512 = vst.msk [vmem:[%s511] sm:$0x1] %vm510, %v509
  %s513 = scalar_lea.vmem %s0, 14
  %v514 = vld [vmem:[%s513] sm:$0x1]
  %515 = vrot.lane.b32.xlu0 %v514, 30
  %v516 = vpop.permute.xlu0 %515
  %vm517 = vcmask 220160
  %s518 = scalar_lea.vmem %s1, 70
  %519 = vst.msk [vmem:[%s518] sm:$0x1] %vm517, %v516
  %s520 = scalar_lea.vmem %s0, 18
  %v521 = vld [vmem:[%s520] sm:$0x1]
  %522 = vrot.lane.b32.xlu0 %v521, 29
  %v523 = vpop.permute.xlu0 %522
  %vm524 = vcmask 220160
  %s525 = scalar_lea.vmem %s1, 89
  %526 = vst.msk [vmem:[%s525] sm:$0x1] %vm524, %v523
  %s527 = scalar_lea.vmem %s0, 3
  %v528 = vld [vmem:[%s527] sm:$0x1]
  %s529 = scalar_lea.vmem %s0, 4
  %v530 = vld [vmem:[%s529] sm:$0x1]
  %vm531 = vcmask 834560
  %v532 = vsel %vm531, %v530, %v528
  %533 = vrot.lane.b32.xlu0 %v532, 26
  %v534 = vpop.permute.xlu0 %533
  %vm535 = vcmask 211968
  %s536 = scalar_lea.vmem %s1, 18
  %537 = vst.msk [vmem:[%s536] sm:$0x1] %vm535, %v534
  %vm538 = vcmask 220368
  %s539 = scalar_lea.vmem %s1, 18
  %540 = vst.msk [vmem:[%s539] sm:$0x1] %vm538, %v534
  %s541 = scalar_lea.vmem %s0, 7
  %v542 = vld [vmem:[%s541] sm:$0x1]
  %s543 = scalar_lea.vmem %s0, 8
  %v544 = vld [vmem:[%s543] sm:$0x1]
  %vm545 = vcmask 842752
  %v546 = vsel %vm545, %v544, %v542
  %547 = vrot.lane.b32.xlu0 %v546, 25
  %v548 = vpop.permute.xlu0 %547
  %vm549 = vcmask 203776
  %s550 = scalar_lea.vmem %s1, 37
  %551 = vst.msk [vmem:[%s550] sm:$0x1] %vm549, %v548
  %vm552 = vcmask 220360
  %s553 = scalar_lea.vmem %s1, 37
  %554 = vst.msk [vmem:[%s553] sm:$0x1] %vm552, %v548
  %s555 = scalar_lea.vmem %s0, 11
  %v556 = vld [vmem:[%s555] sm:$0x1]
  %s557 = scalar_lea.vmem %s0, 12
  %v558 = vld [vmem:[%s557] sm:$0x1]
  %vm559 = vcmask 850944
  %v560 = vsel %vm559, %v558, %v556
  %561 = vrot.lane.b32.xlu0 %v560, 24
  %v562 = vpop.permute.xlu0 %561
  %vm563 = vcmask 195584
  %s564 = scalar_lea.vmem %s1, 56
  %565 = vst.msk [vmem:[%s564] sm:$0x1] %vm563, %v562
  %vm566 = vcmask 220352
  %s567 = scalar_lea.vmem %s1, 56
  %568 = vst.msk [vmem:[%s567] sm:$0x1] %vm566, %v562
  %s569 = scalar_lea.vmem %s0, 15
  %v570 = vld [vmem:[%s569] sm:$0x1]
  %s571 = scalar_lea.vmem %s0, 16
  %v572 = vld [vmem:[%s571] sm:$0x1]
  %vm573 = vcmask 859136
  %v574 = vsel %vm573, %v572, %v570
  %575 = vrot.lane.b32.xlu0 %v574, 23
  %v576 = vpop.permute.xlu0 %575
  %vm577 = vcmask 187392
  %s578 = scalar_lea.vmem %s1, 75
  %579 = vst.msk [vmem:[%s578] sm:$0x1] %vm577, %v576
  %vm580 = vcmask 220344
  %s581 = scalar_lea.vmem %s1, 75
  %582 = vst.msk [vmem:[%s581] sm:$0x1] %vm580, %v576
  %s583 = scalar_lea.vmem %s0, 19
  %v584 = vld [vmem:[%s583] sm:$0x1]
  %s585 = scalar_lea.vmem %s0, 20
  %v586 = vld [vmem:[%s585] sm:$0x1]
  %vm587 = vcmask 867328
  %v588 = vsel %vm587, %v586, %v584
  %589 = vrot.lane.b32.xlu0 %v588, 22
  %v590 = vpop.permute.xlu0 %589
  %vm591 = vcmask 179200
  %s592 = scalar_lea.vmem %s1, 94
  %593 = vst.msk [vmem:[%s592] sm:$0x1] %vm591, %v590
  %vm594 = vcmask 220336
  %s595 = scalar_lea.vmem %s1, 94
  %596 = vst.msk [vmem:[%s595] sm:$0x1] %vm594, %v590
  %v597 = vld [vmem:[%s0] sm:$0x1]
  %s598 = scalar_lea.vmem %s0, 1
  %v599 = vld [vmem:[%s598] sm:$0x1]
  %vm600 = vcmask 883712
  %v601 = vsel %vm600, %v599, %v597
  %602 = vrot.lane.b32.xlu0 %v601, 20
  %v603 = vpop.permute.xlu0 %602
  %vm604 = vcmask 162816
  %s605 = scalar_lea.vmem %s1, 4
  %606 = vst.msk [vmem:[%s605] sm:$0x1] %vm604, %v603
  %vm607 = vcmask 220320
  %s608 = scalar_lea.vmem %s1, 4
  %609 = vst.msk [vmem:[%s608] sm:$0x1] %vm607, %v603
  %s610 = scalar_lea.vmem %s0, 4
  %v611 = vld [vmem:[%s610] sm:$0x1]
  %s612 = scalar_lea.vmem %s0, 5
  %v613 = vld [vmem:[%s612] sm:$0x1]
  %vm614 = vcmask 891904
  %v615 = vsel %vm614, %v613, %v611
  %616 = vrot.lane.b32.xlu0 %v615, 19
  %v617 = vpop.permute.xlu0 %616
  %vm618 = vcmask 154624
  %s619 = scalar_lea.vmem %s1, 23
  %620 = vst.msk [vmem:[%s619] sm:$0x1] %vm618, %v617
  %vm621 = vcmask 220312
  %s622 = scalar_lea.vmem %s1, 23
  %623 = vst.msk [vmem:[%s622] sm:$0x1] %vm621, %v617
  %s624 = scalar_lea.vmem %s0, 8
  %v625 = vld [vmem:[%s624] sm:$0x1]
  %s626 = scalar_lea.vmem %s0, 9
  %v627 = vld [vmem:[%s626] sm:$0x1]
  %vm628 = vcmask 900096
  %v629 = vsel %vm628, %v627, %v625
  %630 = vrot.lane.b32.xlu0 %v629, 18
  %v631 = vpop.permute.xlu0 %630
  %vm632 = vcmask 146432
  %s633 = scalar_lea.vmem %s1, 42
  %634 = vst.msk [vmem:[%s633] sm:$0x1] %vm632, %v631
  %vm635 = vcmask 220304
  %s636 = scalar_lea.vmem %s1, 42
  %637 = vst.msk [vmem:[%s636] sm:$0x1] %vm635, %v631
  %s638 = scalar_lea.vmem %s0, 12
  %v639 = vld [vmem:[%s638] sm:$0x1]
  %s640 = scalar_lea.vmem %s0, 13
  %v641 = vld [vmem:[%s640] sm:$0x1]
  %vm642 = vcmask 908288
  %v643 = vsel %vm642, %v641, %v639
  %644 = vrot.lane.b32.xlu0 %v643, 17
  %v645 = vpop.permute.xlu0 %644
  %vm646 = vcmask 138240
  %s647 = scalar_lea.vmem %s1, 61
  %648 = vst.msk [vmem:[%s647] sm:$0x1] %vm646, %v645
  %vm649 = vcmask 220296
  %s650 = scalar_lea.vmem %s1, 61
  %651 = vst.msk [vmem:[%s650] sm:$0x1] %vm649, %v645
  %s652 = scalar_lea.vmem %s0, 16
  %v653 = vld [vmem:[%s652] sm:$0x1]
  %s654 = scalar_lea.vmem %s0, 17
  %v655 = vld [vmem:[%s654] sm:$0x1]
  %vm656 = vcmask 916480
  %v657 = vsel %vm656, %v655, %v653
  %658 = vrot.lane.b32.xlu0 %v657, 16
  %v659 = vpop.permute.xlu0 %658
  %vm660 = vcmask 130048
  %s661 = scalar_lea.vmem %s1, 80
  %662 = vst.msk [vmem:[%s661] sm:$0x1] %vm660, %v659
  %vm663 = vcmask 220288
  %s664 = scalar_lea.vmem %s1, 80
  %665 = vst.msk [vmem:[%s664] sm:$0x1] %vm663, %v659
  %s666 = scalar_lea.vmem %s0, 1
  %v667 = vld [vmem:[%s666] sm:$0x1]
  %s668 = scalar_lea.vmem %s0, 2
  %v669 = vld [vmem:[%s668] sm:$0x1]
  %vm670 = vcmask 941056
  %v671 = vsel %vm670, %v669, %v667
  %672 = vrot.lane.b32.xlu0 %v671, 13
  %v673 = vpop.permute.xlu0 %672
  %vm674 = vcmask 105472
  %s675 = scalar_lea.vmem %s1, 9
  %676 = vst.msk [vmem:[%s675] sm:$0x1] %vm674, %v673
  %vm677 = vcmask 220264
  %s678 = scalar_lea.vmem %s1, 9
  %679 = vst.msk [vmem:[%s678] sm:$0x1] %vm677, %v673
  %s680 = scalar_lea.vmem %s0, 5
  %v681 = vld [vmem:[%s680] sm:$0x1]
  %s682 = scalar_lea.vmem %s0, 6
  %v683 = vld [vmem:[%s682] sm:$0x1]
  %vm684 = vcmask 949248
  %v685 = vsel %vm684, %v683, %v681
  %686 = vrot.lane.b32.xlu0 %v685, 12
  %v687 = vpop.permute.xlu0 %686
  %vm688 = vcmask 97280
  %s689 = scalar_lea.vmem %s1, 28
  %690 = vst.msk [vmem:[%s689] sm:$0x1] %vm688, %v687
  %vm691 = vcmask 220256
  %s692 = scalar_lea.vmem %s1, 28
  %693 = vst.msk [vmem:[%s692] sm:$0x1] %vm691, %v687
  %s694 = scalar_lea.vmem %s0, 9
  %v695 = vld [vmem:[%s694] sm:$0x1]
  %s696 = scalar_lea.vmem %s0, 10
  %v697 = vld [vmem:[%s696] sm:$0x1]
  %vm698 = vcmask 957440
  %v699 = vsel %vm698, %v697, %v695
  %700 = vrot.lane.b32.xlu0 %v699, 11
  %v701 = vpop.permute.xlu0 %700
  %vm702 = vcmask 89088
  %s703 = scalar_lea.vmem %s1, 47
  %704 = vst.msk [vmem:[%s703] sm:$0x1] %vm702, %v701
  %vm705 = vcmask 220248
  %s706 = scalar_lea.vmem %s1, 47
  %707 = vst.msk [vmem:[%s706] sm:$0x1] %vm705, %v701
  %s708 = scalar_lea.vmem %s0, 13
  %v709 = vld [vmem:[%s708] sm:$0x1]
  %s710 = scalar_lea.vmem %s0, 14
  %v711 = vld [vmem:[%s710] sm:$0x1]
  %vm712 = vcmask 965632
  %v713 = vsel %vm712, %v711, %v709
  %714 = vrot.lane.b32.xlu0 %v713, 10
  %v715 = vpop.permute.xlu0 %714
  %vm716 = vcmask 80896
  %s717 = scalar_lea.vmem %s1, 66
  %718 = vst.msk [vmem:[%s717] sm:$0x1] %vm716, %v715
  %vm719 = vcmask 220240
  %s720 = scalar_lea.vmem %s1, 66
  %721 = vst.msk [vmem:[%s720] sm:$0x1] %vm719, %v715
  %s722 = scalar_lea.vmem %s0, 17
  %v723 = vld [vmem:[%s722] sm:$0x1]
  %s724 = scalar_lea.vmem %s0, 18
  %v725 = vld [vmem:[%s724] sm:$0x1]
  %vm726 = vcmask 973824
  %v727 = vsel %vm726, %v725, %v723
  %728 = vrot.lane.b32.xlu0 %v727, 9
  %v729 = vpop.permute.xlu0 %728
  %vm730 = vcmask 72704
  %s731 = scalar_lea.vmem %s1, 85
  %732 = vst.msk [vmem:[%s731] sm:$0x1] %vm730, %v729
  %vm733 = vcmask 220232
  %s734 = scalar_lea.vmem %s1, 85
  %735 = vst.msk [vmem:[%s734] sm:$0x1] %vm733, %v729
  %s736 = scalar_lea.vmem %s0, 2
  %v737 = vld [vmem:[%s736] sm:$0x1]
  %s738 = scalar_lea.vmem %s0, 3
  %v739 = vld [vmem:[%s738] sm:$0x1]
  %vm740 = vcmask 998400
  %v741 = vsel %vm740, %v739, %v737
  %742 = vrot.lane.b32.xlu0 %v741, 6
  %v743 = vpop.permute.xlu0 %742
  %vm744 = vcmask 48128
  %s745 = scalar_lea.vmem %s1, 14
  %746 = vst.msk [vmem:[%s745] sm:$0x1] %vm744, %v743
  %vm747 = vcmask 220208
  %s748 = scalar_lea.vmem %s1, 14
  %749 = vst.msk [vmem:[%s748] sm:$0x1] %vm747, %v743
  %s750 = scalar_lea.vmem %s0, 6
  %v751 = vld [vmem:[%s750] sm:$0x1]
  %s752 = scalar_lea.vmem %s0, 7
  %v753 = vld [vmem:[%s752] sm:$0x1]
  %vm754 = vcmask 1006592
  %v755 = vsel %vm754, %v753, %v751
  %756 = vrot.lane.b32.xlu0 %v755, 5
  %v757 = vpop.permute.xlu0 %756
  %vm758 = vcmask 39936
  %s759 = scalar_lea.vmem %s1, 33
  %760 = vst.msk [vmem:[%s759] sm:$0x1] %vm758, %v757
  %vm761 = vcmask 220200
  %s762 = scalar_lea.vmem %s1, 33
  %763 = vst.msk [vmem:[%s762] sm:$0x1] %vm761, %v757
  %s764 = scalar_lea.vmem %s0, 10
  %v765 = vld [vmem:[%s764] sm:$0x1]
  %s766 = scalar_lea.vmem %s0, 11
  %v767 = vld [vmem:[%s766] sm:$0x1]
  %vm768 = vcmask 1014784
  %v769 = vsel %vm768, %v767, %v765
  %770 = vrot.lane.b32.xlu0 %v769, 4
  %v771 = vpop.permute.xlu0 %770
  %vm772 = vcmask 31744
  %s773 = scalar_lea.vmem %s1, 52
  %774 = vst.msk [vmem:[%s773] sm:$0x1] %vm772, %v771
  %vm775 = vcmask 220192
  %s776 = scalar_lea.vmem %s1, 52
  %777 = vst.msk [vmem:[%s776] sm:$0x1] %vm775, %v771
  %s778 = scalar_lea.vmem %s0, 14
  %v779 = vld [vmem:[%s778] sm:$0x1]
  %s780 = scalar_lea.vmem %s0, 15
  %v781 = vld [vmem:[%s780] sm:$0x1]
  %vm782 = vcmask 1022976
  %v783 = vsel %vm782, %v781, %v779
  %784 = vrot.lane.b32.xlu0 %v783, 3
  %v785 = vpop.permute.xlu0 %784
  %vm786 = vcmask 23552
  %s787 = scalar_lea.vmem %s1, 71
  %788 = vst.msk [vmem:[%s787] sm:$0x1] %vm786, %v785
  %vm789 = vcmask 220184
  %s790 = scalar_lea.vmem %s1, 71
  %791 = vst.msk [vmem:[%s790] sm:$0x1] %vm789, %v785
  %s792 = scalar_lea.vmem %s0, 18
  %v793 = vld [vmem:[%s792] sm:$0x1]
  %s794 = scalar_lea.vmem %s0, 19
  %v795 = vld [vmem:[%s794] sm:$0x1]
  %vm796 = vcmask 1031168
  %v797 = vsel %vm796, %v795, %v793
  %798 = vrot.lane.b32.xlu0 %v797, 2
  %v799 = vpop.permute.xlu0 %798
  %vm800 = vcmask 15360
  %s801 = scalar_lea.vmem %s1, 90
  %802 = vst.msk [vmem:[%s801] sm:$0x1] %vm800, %v799
  %vm803 = vcmask 220176
  %s804 = scalar_lea.vmem %s1, 90
  %805 = vst.msk [vmem:[%s804] sm:$0x1] %vm803, %v799

// kernel: sc_conv_forward.2
$region0: #{sc_conv_forward.2}
  #allocation0 [shape = 'u32[]', space=smem, size = 0x4, offset = 0x4, fixed_abs, tag = 'smem constant byte address 0x4 - core index']
  #allocation1 [shape = 'u32[144,128]{1,0:T(1,128)}', space=vmem, size = 0x12000, scoped, tag = 'internal scratch']
  %s0 = inlined_call_operand.vmem [shape: bf16[96,432], index: 0, kind: input, shape index: {}]
  %s1 = inlined_call_operand.vmem [shape: bf16[432,128], index: 1, kind: input, shape index: {}]
  %s2 = inlined_call_operand.vmem [shape: f32[1,128], index: 2, kind: input, shape index: {}]
  %s3 = inlined_call_operand.vmem [shape: f32[96,128], index: 3, kind: output, shape index: {}]
  %s4 = sld [smem:[#allocation0]]
  $region45: #{sc_conv_forward.2} parent=0
    _
  %s6 = ssub.s32 1, %s4
  %s7 = scalar_select 0, %s6, %s4
  loop: start=0, step=1, limit=4
  $region2: #{sc_conv_forward.2} parent=0 // loop_pre_header
    _
  $region3: #{sc_conv_forward.2} parent=0 // loop_header
    %s9 = sphi 0, %s13
    %p10 = scmp.ge.s32.totalorder %s9, 4
    %s19 = sphi 0, %s21
    %s22 = sphi 0, %s19
    %s23 = sphi 0, %s22
    %s39 = sphi 0, %s23
    %s43 = sphi 0, %s43
    %s45 = sphi 0, %s43
    %s46 = sphi 0, %s45
    %s60 = sphi 0, %s46
    %s64 = sphi 0, %s64
    %s66 = sphi 0, %s64
    %s67 = sphi 0, %s66
    %s81 = sphi 0, %s67
    %s87 = sphi 0, %s89
    %s90 = sphi 0, %s87
    %s91 = sphi 0, %s90
    %s107 = sphi 0, %s91
  $region4: #{sc_conv_forward.2} parent=0 // loop_header_branch
    %12 = sbr.rel (%p10) target = $region8
  $region5: #{sc_conv_forward.2} parent=0 // loop_body
    %s14 = ssub.s32 %s9, 1
    %s15 = ssub.s32 %s9, 2
    %s16 = sadd.s32 %s9, 1
    %s17 = ssub.s32 %s9, %s16
    %p18 = scmp.eq.s32.totalorder %s17, 0
    %s20 = sadd.s32 %s19, 1
    %s21 = scalar_select %p18, %s19, %s20
    %p24 = pneg %p18
    %p25 = scmp.eq.s32.totalorder %s9, 1
    %p26 = por %p24, %p25
    %p27 = scmp.ne.s32.totalorder %s19, %s22
    %p28 = scmp.eq.s32.totalorder %s9, 0
    %p29 = por %p27, %p28
    %p30 = scmp.ne.s32.totalorder %s19, %s22
    %p31 = scmp.eq.s32.totalorder %s14, 1
    %p32 = por %p30, %p31
    %p33 = scmp.ne.s32.totalorder %s22, %s23
    %p34 = scmp.eq.s32.totalorder %s14, 0
    %p35 = por %p33, %p34
    %p36 = scmp.ne.s32.totalorder %s22, %s23
    %p37 = scmp.eq.s32.totalorder %s15, 1
    %p38 = por %p36, %p37
    %p40 = scmp.ne.s32.totalorder %s23, %s39
    %p41 = scmp.eq.s32.totalorder %s15, 0
    %p42 = por %p40, %p41
    %s44 = sadd.s32 %s43, 1
    %p47 = scmp.eq.s32.totalorder %s9, 1
    %p48 = scmp.ne.s32.totalorder %s43, %s45
    %p49 = scmp.eq.s32.totalorder %s9, 0
    %p50 = por %p48, %p49
    %p51 = scmp.ne.s32.totalorder %s43, %s45
    %p52 = scmp.eq.s32.totalorder %s14, 1
    %p53 = por %p51, %p52
    %p54 = scmp.ne.s32.totalorder %s45, %s46
    %p55 = scmp.eq.s32.totalorder %s14, 0
    %p56 = por %p54, %p55
    %p57 = scmp.ne.s32.totalorder %s45, %s46
    %p58 = scmp.eq.s32.totalorder %s15, 1
    %p59 = por %p57, %p58
    %p61 = scmp.ne.s32.totalorder %s46, %s60
    %p62 = scmp.eq.s32.totalorder %s15, 0
    %p63 = por %p61, %p62
    %s65 = sadd.s32 %s64, 1
    %p68 = scmp.eq.s32.totalorder %s9, 1
    %p69 = scmp.ne.s32.totalorder %s64, %s66
    %p70 = scmp.eq.s32.totalorder %s9, 0
    %p71 = por %p69, %p70
    %p72 = scmp.ne.s32.totalorder %s64, %s66
    %p73 = scmp.eq.s32.totalorder %s14, 1
    %p74 = por %p72, %p73
    %p75 = scmp.ne.s32.totalorder %s66, %s67
    %p76 = scmp.eq.s32.totalorder %s14, 0
    %p77 = por %p75, %p76
    %p78 = scmp.ne.s32.totalorder %s66, %s67
    %p79 = scmp.eq.s32.totalorder %s15, 1
    %p80 = por %p78, %p79
    %p82 = scmp.ne.s32.totalorder %s67, %s81
    %p83 = scmp.eq.s32.totalorder %s15, 0
    %p84 = por %p82, %p83
    %s85 = ssub.s32 %s9, %s16
    %p86 = scmp.eq.s32.totalorder %s85, 0
    %s88 = sadd.s32 %s87, 1
    %s89 = scalar_select %p86, %s87, %s88
    %p92 = pneg %p86
    %p93 = scmp.eq.s32.totalorder %s9, 1
    %p94 = por %p92, %p93
    %p95 = scmp.ne.s32.totalorder %s87, %s90
    %p96 = scmp.eq.s32.totalorder %s9, 0
    %p97 = por %p95, %p96
    %p98 = scmp.ne.s32.totalorder %s87, %s90
    %p99 = scmp.eq.s32.totalorder %s14, 1
    %p100 = por %p98, %p99
    %p101 = scmp.ne.s32.totalorder %s90, %s91
    %p102 = scmp.eq.s32.totalorder %s14, 0
    %p103 = por %p101, %p102
    %p104 = scmp.ne.s32.totalorder %s90, %s91
    %p105 = scmp.eq.s32.totalorder %s15, 1
    %p106 = por %p104, %p105
    %p108 = scmp.ne.s32.totalorder %s91, %s107
    %p109 = scmp.eq.s32.totalorder %s15, 0
    %p110 = por %p108, %p109
    %p111 = scmp.le.s32.totalorder 1, %s9
    %p112 = scmp.lt.s32.totalorder %s9, 3
    %p113 = pnand %p111, %p112
    %p114 = pneg %p113
    // Predicated region
    $region9: #{sc_conv_forward.2} parent=5 // pred_check
      _
    $region10: #{sc_conv_forward.2} parent=5 // pred_check_branch
      %116 = sbr.rel (%p113) target = $region12
    $region11: #{sc_conv_forward.2} parent=5 // pred_region
      %s117 = ssub.s32 %s9, 1
      // Predicated region
      $region13: #{sc_conv_forward.2} parent=11 // pred_check
        %p118 = pneg %p56
      $region14: #{sc_conv_forward.2} parent=11 // pred_check_branch
        %120 = sbr.rel (%p118) target = $region16
      $region15: #{sc_conv_forward.2} parent=11 // pred_region
        _
      $region16: #{sc_conv_forward.2} parent=11 // pred_fallthru
        _
      // Predicated region
      $region17: #{sc_conv_forward.2} parent=11 // pred_check
        %p121 = pneg %p77
      $region18: #{sc_conv_forward.2} parent=11 // pred_check_branch
        %123 = sbr.rel (%p121) target = $region20
      $region19: #{sc_conv_forward.2} parent=11 // pred_region
        _
      $region20: #{sc_conv_forward.2} parent=11 // pred_fallthru
        _
    $region12: #{sc_conv_forward.2} parent=5 // pred_fallthru
      _
    %p124 = scmp.lt.s32.totalorder %s9, 2
    // Predicated region
    $region21: #{sc_conv_forward.2} parent=5 // pred_check
      %p125 = pneg %p124
    $region22: #{sc_conv_forward.2} parent=5 // pred_check_branch
      %127 = sbr.rel (%p125) target = $region24
    $region23: #{sc_conv_forward.2} parent=5 // pred_region
      // Predicated region
      $region25: #{sc_conv_forward.2} parent=23 // pred_check
        %p128 = pneg %p29
      $region26: #{sc_conv_forward.2} parent=23 // pred_check_branch
        %130 = sbr.rel (%p128) target = $region28
      $region27: #{sc_conv_forward.2} parent=23 // pred_region
        %s131 = smul.u32 6, %s9
        %p132 = scmp.lt.s32.totalorder %s131, 11
        %s133 = scalar_select %p132, %s131, 11
        %s134 = smul.addr %s133, 4
        %s135 = smul.addr %s134, 4
        %s136 = scalar_lea.vmem %s0, %s135
        %s137 = smul.u32 6, %s9
      $region28: #{sc_conv_forward.2} parent=23 // pred_fallthru
        _
    $region24: #{sc_conv_forward.2} parent=5 // pred_fallthru
      _
    %p138 = scmp.le.s32.totalorder 1, %s9
    %p139 = scmp.lt.s32.totalorder %s9, 3
    %p140 = pnand %p138, %p139
    %p141 = pneg %p140
    // Predicated region
    $region29: #{sc_conv_forward.2} parent=5 // pred_check
      _
    $region30: #{sc_conv_forward.2} parent=5 // pred_check_branch
      %143 = sbr.rel (%p140) target = $region32
    $region31: #{sc_conv_forward.2} parent=5 // pred_region
      %s144 = ssub.s32 %s9, 1
      %s145 = smul.u32 6, %s14
      %p146 = scmp.lt.s32.totalorder %s145, 11
      %s147 = scalar_select %p146, %s145, 11
      %s148 = smul.addr %s147, 4
      %s149 = smul.addr %s148, 4
      %s150 = scalar_lea.vmem %s0, %s149
      %p151 = pneg %p35
      %p152 = pneg %p32
      %p153 = pneg %p56
      %p154 = pneg %p53
      %p155 = pneg %p77
      %p156 = pneg %p74
      %p157 = pneg %p103
      %p158 = pneg %p100
      %s159 = smul.u32 6, %s14
      %p160 = scmp.lt.s32.totalorder %s159, 11
      %s161 = scalar_select %p160, %s159, 11
      %s162 = smul.addr %s161, 8
      %s163 = scalar_lea.vmem %s3, %s162
      %s164 = smul.u32 6, %s14
      %p165 = scmp.lt.s32.totalorder %s164, 11
      %s166 = scalar_select %p165, %s164, 11
      %s167 = smul.addr %s166, 4
      %s168 = smul.addr %s167, 4
      %s169 = scalar_lea.vmem %s0, %s168
      %s170 = smul.u32 6, %s14
      %s171 = smul.u32 6, %s14
      %p172 = scmp.lt.s32.totalorder %s171, 11
      %s173 = scalar_select %p172, %s171, 11
      %s174 = smul.addr %s173, 8
      %s175 = scalar_lea.vmem %s3, %s174
      %s176 = smul.u32 6, %s14
      %v178 = vld [vmem:[%s169] sm:$0xff]
      %v179 = vld [vmem:[%s169 + $0x8] sm:$0xff]
      %v180 = vld [vmem:[%s169 + $0x10] sm:$0xff]
      %v181 = vld [vmem:[%s169 + $0x18] sm:$0xff]
      %v182 = vld [vmem:[%s169 + $0x20] sm:$0xff]
      %v183 = vld [vmem:[%s169 + $0x28] sm:$0xff]
      %v184 = vld [vmem:[%s169 + $0x30] sm:$0xff]
      %v185 = vld [vmem:[%s169 + $0x38] sm:$0xff]
      %v186 = vld [vmem:[%s169 + $0x40] sm:$0xff]
      %v187 = vld [vmem:[%s169 + $0x48] sm:$0xff]
      %v188 = vld [vmem:[%s169 + $0x50] sm:$0xff]
      %v189 = vld [vmem:[%s169 + $0x58] sm:$0xff]
      %v190 = vld [vmem:[%s1] sm:$0xf]
      %v191 = vld [vmem:[%s1 + $0x4] sm:$0xf]
      %v192 = vld [vmem:[%s1 + $0x8] sm:$0xf]
      %v193 = vld [vmem:[%s1 + $0xc] sm:$0xf]
      %v194 = vld [vmem:[%s1 + $0x10] sm:$0xf]
      %v195 = vld [vmem:[%s1 + $0x14] sm:$0xf]
      %v196 = vld [vmem:[%s1 + $0x18] sm:$0xf]
      %v197 = vld [vmem:[%s1 + $0x1c] sm:$0xf]
      %v198 = vld [vmem:[%s1 + $0x20] sm:$0xf]
      %v199 = vld [vmem:[%s1 + $0x24] sm:$0xf]
      %v200 = vld [vmem:[%s1 + $0x28] sm:$0xf]
      %v201 = vld [vmem:[%s1 + $0x2c] sm:$0xf]
      %v202 = vld [vmem:[%s1 + $0x30] sm:$0xf]
      %v203 = vld [vmem:[%s1 + $0x34] sm:$0xf]
      %v204 = vld [vmem:[%s1 + $0x38] sm:$0xf]
      %v205 = vld [vmem:[%s1 + $0x3c] sm:$0xf]
      %v206 = vld [vmem:[%s1 + $0x40] sm:$0xf]
      %v207 = vld [vmem:[%s1 + $0x44] sm:$0xf]
      %v208 = vld [vmem:[%s1 + $0x48] sm:$0xf]
      %v209 = vld [vmem:[%s1 + $0x4c] sm:$0xf]
      %v210 = vld [vmem:[%s1 + $0x50] sm:$0xf]
      %v211 = vld [vmem:[%s1 + $0x54] sm:$0xf]
      %v212 = vld [vmem:[%s1 + $0x58] sm:$0xf]
      %v213 = vld [vmem:[%s1 + $0x5c] sm:$0xf]
      %v214 = vld [vmem:[%s1 + $0x60] sm:$0xf]
      %v215 = vld [vmem:[%s1 + $0x64] sm:$0xf]
      %v216 = vld [vmem:[%s1 + $0x68] sm:$0xf]
      %v217 = vld [vmem:[%s1 + $0x6c] sm:$0xf]
      %v218 = vld [vmem:[%s1 + $0x70] sm:$0xf]
      %v219 = vld [vmem:[%s1 + $0x74] sm:$0xf]
      %v220 = vld [vmem:[%s1 + $0x78] sm:$0xf]
      %v221 = vld [vmem:[%s1 + $0x7c] sm:$0xf]
      %v222 = vld [vmem:[%s1 + $0x80] sm:$0xf]
      %v223 = vld [vmem:[%s1 + $0x84] sm:$0xf]
      %v224 = vld [vmem:[%s1 + $0x88] sm:$0xf]
      %v225 = vld [vmem:[%s1 + $0x8c] sm:$0xf]
      %v226 = vld [vmem:[%s1 + $0x90] sm:$0xf]
      %v227 = vld [vmem:[%s1 + $0x94] sm:$0xf]
      %v228 = vld [vmem:[%s1 + $0x98] sm:$0xf]
      %v229 = vld [vmem:[%s1 + $0x9c] sm:$0xf]
      %v230 = vld [vmem:[%s1 + $0xa0] sm:$0xf]
      %v231 = vld [vmem:[%s1 + $0xa4] sm:$0xf]
      %v232 = vld [vmem:[%s1 + $0xa8] sm:$0xf]
      %v233 = vld [vmem:[%s1 + $0xac] sm:$0xf]
      %v234 = vld [vmem:[%s1 + $0xb0] sm:$0xf]
      %v235 = vld [vmem:[%s1 + $0xb4] sm:$0xf]
      %v236 = vld [vmem:[%s1 + $0xb8] sm:$0xf]
      %v237 = vld [vmem:[%s1 + $0xbc] sm:$0xf]
      %v238 = vld [vmem:[%s1 + $0xc0] sm:$0xf]
      %v239 = vld [vmem:[%s1 + $0xc4] sm:$0xf]
      %v240 = vld [vmem:[%s1 + $0xc8] sm:$0xf]
      %v241 = vld [vmem:[%s1 + $0xcc] sm:$0xf]
      %v242 = vld [vmem:[%s1 + $0xd0] sm:$0xf]
      %v243 = vld [vmem:[%s1 + $0xd4] sm:$0xf]
      %v244 = vld [vmem:[%s2] sm:$0x1]
      %v246 = vlaneseq
      %v247 = vshrl.u32 %v246, 7
      %v248 = vsub.s32 0, %v247
      %v249 = vrot.slane %v244, %v248
      %v263 = vunpack.c.l.b16 %v178
      %v264 = vunpack.c.h.b16 %v178
      %v265 = vunpack.c.l.b16 %v179
      %v266 = vunpack.c.h.b16 %v179
      %v267 = vunpack.c.l.b16 %v180
      %v268 = vunpack.c.h.b16 %v180
      %v269 = vunpack.c.l.b16 %v181
      %v270 = vunpack.c.h.b16 %v181
      %v271 = vunpack.c.l.b16 %v182
      %v272 = vunpack.c.h.b16 %v182
      %v273 = vunpack.c.l.b16 %v183
      %v274 = vunpack.c.h.b16 %v183
      %v275 = vunpack.c.l.b16 %v184
      %v276 = vunpack.c.h.b16 %v184
      %v277 = vunpack.c.l.b16 %v185
      %v278 = vunpack.c.h.b16 %v185
      %v279 = vunpack.c.l.b16 %v186
      %v280 = vunpack.c.h.b16 %v186
      %v281 = vunpack.c.l.b16 %v187
      %v282 = vunpack.c.h.b16 %v187
      %v283 = vunpack.c.l.b16 %v188
      %v284 = vunpack.c.h.b16 %v188
      %v285 = vunpack.c.l.b16 %v189
      %v286 = vunpack.c.h.b16 %v189
      %v287 = vpack.c.b16 %v267, %v263
      %v288 = vpack.c.b16 %v268, %v264
      %v289 = vpack.c.b16 %v269, %v265
      %v290 = vpack.c.b16 %v270, %v266
      %v291 = vpack.c.b16 %v275, %v271
      %v292 = vpack.c.b16 %v276, %v272
      %v293 = vpack.c.b16 %v277, %v273
      %v294 = vpack.c.b16 %v278, %v274
      %v295 = vpack.c.b16 %v283, %v279
      %v296 = vpack.c.b16 %v284, %v280
      %v297 = vpack.c.b16 %v285, %v281
      %v298 = vpack.c.b16 %v286, %v282
      %v362 = vunpack.c.l.b16 %v190
      %v363 = vunpack.c.l.b16 %v191
      %v364 = vunpack.c.l.b16 %v192
      %v365 = vunpack.c.l.b16 %v193
      %v366 = vunpack.c.l.b16 %v194
      %v367 = vunpack.c.l.b16 %v195
      %v368 = vunpack.c.l.b16 %v196
      %v369 = vunpack.c.l.b16 %v197
      %v370 = vunpack.c.l.b16 %v198
      %v371 = vunpack.c.l.b16 %v199
      %v372 = vunpack.c.l.b16 %v200
      %v373 = vunpack.c.l.b16 %v201
      %v374 = vunpack.c.l.b16 %v202
      %v375 = vunpack.c.l.b16 %v203
      %v376 = vunpack.c.l.b16 %v204
      %v377 = vunpack.c.l.b16 %v205
      %v378 = vunpack.c.l.b16 %v206
      %v379 = vunpack.c.l.b16 %v207
      %v380 = vunpack.c.l.b16 %v208
      %v381 = vunpack.c.l.b16 %v209
      %v382 = vunpack.c.l.b16 %v210
      %v383 = vunpack.c.l.b16 %v211
      %v384 = vunpack.c.l.b16 %v212
      %v385 = vunpack.c.l.b16 %v213
      %v386 = vunpack.c.l.b16 %v214
      %v387 = vunpack.c.l.b16 %v215
      %v388 = vunpack.c.l.b16 %v216
      %v389 = vunpack.c.l.b16 %v217
      %v390 = vunpack.c.l.b16 %v218
      %v391 = vunpack.c.l.b16 %v219
      %v392 = vunpack.c.l.b16 %v220
      %v393 = vunpack.c.l.b16 %v221
      %v394 = vunpack.c.l.b16 %v222
      %v395 = vunpack.c.l.b16 %v223
      %v396 = vunpack.c.l.b16 %v224
      %v397 = vunpack.c.l.b16 %v225
      %v398 = vunpack.c.l.b16 %v226
      %v399 = vunpack.c.l.b16 %v227
      %v400 = vunpack.c.l.b16 %v228
      %v401 = vunpack.c.l.b16 %v229
      %v402 = vunpack.c.l.b16 %v230
      %v403 = vunpack.c.l.b16 %v231
      %v404 = vunpack.c.l.b16 %v232
      %v405 = vunpack.c.l.b16 %v233
      %v406 = vunpack.c.l.b16 %v234
      %v407 = vunpack.c.l.b16 %v235
      %v408 = vunpack.c.l.b16 %v236
      %v409 = vunpack.c.l.b16 %v237
      %v410 = vunpack.c.l.b16 %v238
      %v411 = vunpack.c.l.b16 %v239
      %v412 = vunpack.c.l.b16 %v240
      %v413 = vunpack.c.l.b16 %v241
      %v414 = vunpack.c.l.b16 %v242
      %v415 = vunpack.c.l.b16 %v243
      %v416 = vpack.c.b16 %v363, %v362
      %v417 = vpack.c.b16 %v365, %v364
      %v418 = vpack.c.b16 %v367, %v366
      %v419 = vpack.c.b16 %v369, %v368
      %v420 = vpack.c.b16 %v371, %v370
      %v421 = vpack.c.b16 %v373, %v372
      %v422 = vpack.c.b16 %v375, %v374
      %v423 = vpack.c.b16 %v377, %v376
      %v424 = vpack.c.b16 %v379, %v378
      %v425 = vpack.c.b16 %v381, %v380
      %v426 = vpack.c.b16 %v383, %v382
      %v427 = vpack.c.b16 %v385, %v384
      %v428 = vpack.c.b16 %v387, %v386
      %v429 = vpack.c.b16 %v389, %v388
      %v430 = vpack.c.b16 %v391, %v390
      %v431 = vpack.c.b16 %v393, %v392
      %v432 = vpack.c.b16 %v395, %v394
      %v433 = vpack.c.b16 %v397, %v396
      %v434 = vpack.c.b16 %v399, %v398
      %v435 = vpack.c.b16 %v401, %v400
      %v436 = vpack.c.b16 %v403, %v402
      %v437 = vpack.c.b16 %v405, %v404
      %v438 = vpack.c.b16 %v407, %v406
      %v439 = vpack.c.b16 %v409, %v408
      %v440 = vpack.c.b16 %v411, %v410
      %v441 = vpack.c.b16 %v413, %v412
      %v442 = vpack.c.b16 %v415, %v414
      %vm470 = vcmask 392192
      %v472 = vsel %vm470, %v290, 0
      %v475 = vsel %vm470, %v294, 0
      %v478 = vsel %vm470, %v298, 0
      %480 = vmatprep.subr.bf16.mxu0 0
      %481 = vmatpush1.bf16.msra.mxu0 %v416
      %482 = vmatprep.subr.bf16.mxu0 0
      %483 = vmatpush1.bf16.msra.mxu0 %v417
      %484 = vmatprep.subr.bf16.mxu0 0
      %485 = vmatpush1.bf16.msra.mxu0 %v418
      %486 = vmatprep.subr.bf16.mxu0 0
      %487 = vmatpush1.bf16.msra.mxu0 %v419
      %488 = vmatprep.subr.bf16.mxu0 0
      %489 = vmatpush1.bf16.msra.mxu0 %v420
      %490 = vmatprep.subr.bf16.mxu0 0
      %491 = vmatpush1.bf16.msra.mxu0 %v421
      %492 = vmatprep.subr.bf16.mxu0 0
      %493 = vmatpush1.bf16.msra.mxu0 %v422
      %494 = vmatprep.subr.bf16.mxu0 0
      %495 = vmatpush1.bf16.msra.mxu0 %v423
      %496 = vmatprep.subr.bf16.mxu0 0
      %497 = vmatpush1.bf16.msra.mxu0 %v424
      %498 = vmatprep.subr.bf16.mxu0 0
      %499 = vmatpush1.bf16.msra.mxu0 %v425
      %500 = vmatprep.subr.bf16.mxu0 0
      %501 = vmatpush1.bf16.msra.mxu0 %v426
      %502 = vmatprep.subr.bf16.mxu0 0
      %503 = vmatpush1.bf16.msra.mxu0 %v427
      %504 = vmatprep.subr.bf16.mxu0 0
      %505 = vmatpush1.bf16.msra.mxu0 %v428
      %506 = vmatprep.subr.bf16.mxu0 0
      %507 = vmatpush1.bf16.msra.mxu0 %v429
      %508 = vmatprep.subr.bf16.mxu0 0
      %509 = vmatpush1.bf16.msra.mxu0 %v430
      %510 = vmatprep.subr.bf16.mxu0 0
      %511 = vmatpush1.bf16.msra.mxu0 %v431
      %512 = vmatprep.mubr.bf16.mxu0 %v288
      %513 = vmatmul.mubr.bf16.gmra.mrb[0].mxu0 %v287
      %v514 = vpop.f32.mrb[0].mxu0
      %v515 = vadd.f32 %v249, %v514
      %v516 = vpop.f32.mrb[0].mxu0
      %v517 = vpop.f32.mrb[0].mxu0
      %v518 = vadd.f32 %v249, %v517
      %v519 = vpop.f32.mrb[0].mxu0
      %520 = vmatprep.mubr.bf16.mxu0 %v292
      %521 = vmatmul.mubr.bf16.gmra.mrb[0].mxu0 %v291
      %v522 = vpop.f32.mrb[0].mxu0
      %v523 = vadd.f32 %v249, %v522
      %v524 = vpop.f32.mrb[0].mxu0
      %v525 = vpop.f32.mrb[0].mxu0
      %v526 = vadd.f32 %v249, %v525
      %v527 = vpop.f32.mrb[0].mxu0
      %528 = vmatprep.mubr.bf16.mxu0 %v296
      %529 = vmatmul.mubr.bf16.gmra.mrb[0].mxu0 %v295
      %v530 = vpop.f32.mrb[0].mxu0
      %v531 = vadd.f32 %v249, %v530
      %v532 = vpop.f32.mrb[0].mxu0
      %v533 = vpop.f32.mrb[0].mxu0
      %v534 = vadd.f32 %v249, %v533
      %v535 = vpop.f32.mrb[0].mxu0
      %536 = vdwg.mxu0
      %537 = vmatprep.subr.bf16.mxu0 0
      %538 = vmatpush1.bf16.msra.mxu0 %v432
      %539 = vmatprep.subr.bf16.mxu0 0
      %540 = vmatpush1.bf16.msra.mxu0 %v433
      %541 = vmatprep.subr.bf16.mxu0 0
      %542 = vmatpush1.bf16.msra.mxu0 %v434
      %543 = vmatprep.subr.bf16.mxu0 0
      %544 = vmatpush1.bf16.msra.mxu0 %v435
      %545 = vmatprep.subr.bf16.mxu0 0
      %546 = vmatpush1.bf16.msra.mxu0 %v436
      %547 = vmatprep.subr.bf16.mxu0 0
      %548 = vmatpush1.bf16.msra.mxu0 %v437
      %549 = vmatprep.subr.bf16.mxu0 0
      %550 = vmatpush1.bf16.msra.mxu0 %v438
      %551 = vmatprep.subr.bf16.mxu0 0
      %552 = vmatpush1.bf16.msra.mxu0 %v439
      %553 = vmatprep.subr.bf16.mxu0 0
      %554 = vmatpush1.bf16.msra.mxu0 %v440
      %555 = vmatprep.subr.bf16.mxu0 0
      %556 = vmatpush1.bf16.msra.mxu0 %v441
      %557 = vmatprep.subr.bf16.mxu0 0
      %558 = vmatpush1.bf16.msra.mxu0 %v442
      %559 = vmatprep.subr.bf16.mxu0 0
      %560 = vmatpush1.bf16.msra.mxu0 0
      %561 = vmatprep.subr.bf16.mxu0 0
      %562 = vmatpush1.bf16.msra.mxu0 0
      %563 = vmatprep.subr.bf16.mxu0 0
      %564 = vmatpush1.bf16.msra.mxu0 0
      %565 = vmatprep.subr.bf16.mxu0 0
      %566 = vmatpush1.bf16.msra.mxu0 0
      %567 = vmatprep.subr.bf16.mxu0 0
      %568 = vmatpush1.bf16.msra.mxu0 0
      %569 = vmatprep.mubr.bf16.mxu0 %v472
      %570 = vmatmul.mubr.bf16.gmra.mrb[0].mxu0 %v289
      %v571 = vpop.f32.mrb[0].mxu0
      %v572 = vadd.f32 %v515, %v571
      %v573 = vpop.f32.mrb[0].mxu0
      %v574 = vpop.f32.mrb[0].mxu0
      %v575 = vadd.f32 %v518, %v574
      %v576 = vpop.f32.mrb[0].mxu0
      %577 = vmatprep.mubr.bf16.mxu0 %v475
      %578 = vmatmul.mubr.bf16.gmra.mrb[0].mxu0 %v293
      %v579 = vpop.f32.mrb[0].mxu0
      %v580 = vadd.f32 %v523, %v579
      %v581 = vpop.f32.mrb[0].mxu0
      %v582 = vpop.f32.mrb[0].mxu0
      %v583 = vadd.f32 %v526, %v582
      %v584 = vpop.f32.mrb[0].mxu0
      %585 = vmatprep.mubr.bf16.mxu0 %v478
      %586 = vmatmul.mubr.bf16.gmra.mrb[0].mxu0 %v297
      %v587 = vpop.f32.mrb[0].mxu0
      %v588 = vadd.f32 %v531, %v587
      %v589 = vpop.f32.mrb[0].mxu0
      %v590 = vpop.f32.mrb[0].mxu0
      %v591 = vadd.f32 %v534, %v590
      %v592 = vpop.f32.mrb[0].mxu0
      %593 = vdwg.mxu0
      %594 = vadd.xlane.f32.xlu0 %v572
      %v595 = vpop.xlane.xlu0 %594
      %596 = vadd.xlane.f32.xlu0 %v575
      %v597 = vpop.xlane.xlu0 %596
      %598 = vadd.xlane.f32.xlu0 %v580
      %v599 = vpop.xlane.xlu0 %598
      %600 = vadd.xlane.f32.xlu0 %v583
      %v601 = vpop.xlane.xlu0 %600
      %602 = vadd.xlane.f32.xlu0 %v588
      %v603 = vpop.xlane.xlu0 %602
      %604 = vadd.xlane.f32.xlu0 %v591
      %v605 = vpop.xlane.xlu0 %604
      %v606 = vmul.f32 %v572, %v572
      %v607 = vmul.f32 %v575, %v575
      %v608 = vmul.f32 %v580, %v580
      %v609 = vmul.f32 %v583, %v583
      %v610 = vmul.f32 %v588, %v588
      %v611 = vmul.f32 %v591, %v591
      %612 = vadd.xlane.f32.xlu0 %v606
      %v613 = vpop.xlane.xlu0 %612
      %614 = vadd.xlane.f32.xlu0 %v607
      %v615 = vpop.xlane.xlu0 %614
      %616 = vadd.xlane.f32.xlu0 %v608
      %v617 = vpop.xlane.xlu0 %616
      %618 = vadd.xlane.f32.xlu0 %v609
      %v619 = vpop.xlane.xlu0 %618
      %620 = vadd.xlane.f32.xlu0 %v610
      %v621 = vpop.xlane.xlu0 %620
      %622 = vadd.xlane.f32.xlu0 %v611
      %v623 = vpop.xlane.xlu0 %622
      %v624 = vlaneseq
      %v625 = vand.u32 %v624, 127
      %vm626 = vcmp.eq.s32.totalorder %v625, 32
      %vm627 = vcmp.eq.s32.totalorder %v625, 33
      %v628 = vsel %vm627, %v613, %v572
      %v629 = vsel %vm627, %v615, %v575
      %v630 = vsel %vm627, %v617, %v580
      %v631 = vsel %vm627, %v619, %v583
      %v632 = vsel %vm627, %v621, %v588
      %v633 = vsel %vm627, %v623, %v591
      %v634 = vsel %vm626, %v595, %v628
      %v635 = vsel %vm626, %v597, %v629
      %v636 = vsel %vm626, %v599, %v630
      %v637 = vsel %vm626, %v601, %v631
      %v638 = vsel %vm626, %v603, %v632
      %v639 = vsel %vm626, %v605, %v633
      %640 = vst [vmem:[%s175] sm:$0xff] %v634
      %641 = vst [vmem:[%s175 + $0x8] sm:$0xff] %v635
      %642 = vst [vmem:[%s175 + $0x10] sm:$0xff] %v636
      %643 = vst [vmem:[%s175 + $0x18] sm:$0xff] %v637
      %644 = vst [vmem:[%s175 + $0x20] sm:$0xff] %v638
      %645 = vst [vmem:[%s175 + $0x28] sm:$0xff] %v639
      %s646 = smul.u32 6, %s14
      %p647 = scmp.lt.s32.totalorder %s646, 11
      %s648 = scalar_select %p647, %s646, 11
      %s649 = smul.addr %s648, 8
      %s650 = scalar_lea.vmem %s3, %s649
      // Predicated region
      $region33: #{sc_conv_forward.2} parent=31 // pred_check
        %p651 = pneg %p100
      $region34: #{sc_conv_forward.2} parent=31 // pred_check_branch
        %653 = sbr.rel (%p651) target = $region36
      $region35: #{sc_conv_forward.2} parent=31 // pred_region
        %s654 = smul.u32 6, %s14
      $region36: #{sc_conv_forward.2} parent=31 // pred_fallthru
        _
    $region32: #{sc_conv_forward.2} parent=5 // pred_fallthru
      _
    %p655 = scmp.le.s32.totalorder 2, %s9
    // Predicated region
    $region37: #{sc_conv_forward.2} parent=5 // pred_check
      %p656 = pneg %p655
    $region38: #{sc_conv_forward.2} parent=5 // pred_check_branch
      %658 = sbr.rel (%p656) target = $region40
    $region39: #{sc_conv_forward.2} parent=5 // pred_region
      %s659 = ssub.s32 %s9, 2
      // Predicated region
      $region41: #{sc_conv_forward.2} parent=39 // pred_check
        %p660 = pneg %p106
      $region42: #{sc_conv_forward.2} parent=39 // pred_check_branch
        %662 = sbr.rel (%p660) target = $region44
      $region43: #{sc_conv_forward.2} parent=39 // pred_region
        %s663 = smul.u32 6, %s15
        %p664 = scmp.lt.s32.totalorder %s663, 11
        %s665 = scalar_select %p664, %s663, 11
        %s666 = smul.addr %s665, 8
        %s667 = scalar_lea.vmem %s3, %s666
      $region44: #{sc_conv_forward.2} parent=39 // pred_fallthru
        _
    $region40: #{sc_conv_forward.2} parent=5 // pred_fallthru
      _
  $region6: #{sc_conv_forward.2} parent=0 // loop_footer
    %s13 = sadd.s32 1, %s9
  $region7: #{sc_conv_forward.2} parent=0 // loop_footer_branch
    %8 = sbr.rel target = $region3
  $region8: #{sc_conv_forward.2} parent=0 // loop_exit
    _

// kernel: custom-call.4
$region0: #{custom-call.4}
  %s0 = inlined_call_operand.vmem [shape: u32[96], index: 0, kind: output, shape index: {}]

// kernel: sc_conv_forward.3
$region0: #{sc_conv_forward.3}
  #allocation0 [shape = 'u32[]', space=smem, size = 0x4, offset = 0x4, fixed_abs, tag = 'smem constant byte address 0x4 - core index']
  #allocation1 [shape = 'u32[144,128]{1,0:T(1,128)}', space=vmem, size = 0x12000, scoped, tag = 'internal scratch']
  %s0 = inlined_call_operand.vmem [shape: bf16[32,864], index: 0, kind: input, shape index: {}]
  %s1 = inlined_call_operand.vmem [shape: bf16[864,128], index: 1, kind: input, shape index: {}]
  %s2 = inlined_call_operand.vmem [shape: f32[1,128], index: 2, kind: input, shape index: {}]
  %s3 = inlined_call_operand.vmem [shape: f32[32,128], index: 3, kind: output, shape index: {}]
  %s4 = sld [smem:[#allocation0]]
  $region45: #{sc_conv_forward.3} parent=0
    _
  %s6 = ssub.s32 1, %s4
  %s7 = scalar_select 0, %s6, %s4
  loop: start=0, step=1, limit=4
  $region2: #{sc_conv_forward.3} parent=0 // loop_pre_header
    _
  $region3: #{sc_conv_forward.3} parent=0 // loop_header
    %s9 = sphi 0, %s13
    %p10 = scmp.ge.s32.totalorder %s9, 4
    %s19 = sphi 0, %s21
    %s22 = sphi 0, %s19
    %s23 = sphi 0, %s22
    %s39 = sphi 0, %s23
    %s43 = sphi 0, %s43
    %s45 = sphi 0, %s43
    %s46 = sphi 0, %s45
    %s60 = sphi 0, %s46
    %s64 = sphi 0, %s64
    %s66 = sphi 0, %s64
    %s67 = sphi 0, %s66
    %s81 = sphi 0, %s67
    %s87 = sphi 0, %s89
    %s90 = sphi 0, %s87
    %s91 = sphi 0, %s90
    %s107 = sphi 0, %s91
  $region4: #{sc_conv_forward.3} parent=0 // loop_header_branch
    %12 = sbr.rel (%p10) target = $region8
  $region5: #{sc_conv_forward.3} parent=0 // loop_body
    %s14 = ssub.s32 %s9, 1
    %s15 = ssub.s32 %s9, 2
    %s16 = sadd.s32 %s9, 1
    %s17 = ssub.s32 %s9, %s16
    %p18 = scmp.eq.s32.totalorder %s17, 0
    %s20 = sadd.s32 %s19, 1
    %s21 = scalar_select %p18, %s19, %s20
    %p24 = pneg %p18
    %p25 = scmp.eq.s32.totalorder %s9, 1
    %p26 = por %p24, %p25
    %p27 = scmp.ne.s32.totalorder %s19, %s22
    %p28 = scmp.eq.s32.totalorder %s9, 0
    %p29 = por %p27, %p28
    %p30 = scmp.ne.s32.totalorder %s19, %s22
    %p31 = scmp.eq.s32.totalorder %s14, 1
    %p32 = por %p30, %p31
    %p33 = scmp.ne.s32.totalorder %s22, %s23
    %p34 = scmp.eq.s32.totalorder %s14, 0
    %p35 = por %p33, %p34
    %p36 = scmp.ne.s32.totalorder %s22, %s23
    %p37 = scmp.eq.s32.totalorder %s15, 1
    %p38 = por %p36, %p37
    %p40 = scmp.ne.s32.totalorder %s23, %s39
    %p41 = scmp.eq.s32.totalorder %s15, 0
    %p42 = por %p40, %p41
    %s44 = sadd.s32 %s43, 1
    %p47 = scmp.eq.s32.totalorder %s9, 1
    %p48 = scmp.ne.s32.totalorder %s43, %s45
    %p49 = scmp.eq.s32.totalorder %s9, 0
    %p50 = por %p48, %p49
    %p51 = scmp.ne.s32.totalorder %s43, %s45
    %p52 = scmp.eq.s32.totalorder %s14, 1
    %p53 = por %p51, %p52
    %p54 = scmp.ne.s32.totalorder %s45, %s46
    %p55 = scmp.eq.s32.totalorder %s14, 0
    %p56 = por %p54, %p55
    %p57 = scmp.ne.s32.totalorder %s45, %s46
    %p58 = scmp.eq.s32.totalorder %s15, 1
    %p59 = por %p57, %p58
    %p61 = scmp.ne.s32.totalorder %s46, %s60
    %p62 = scmp.eq.s32.totalorder %s15, 0
    %p63 = por %p61, %p62
    %s65 = sadd.s32 %s64, 1
    %p68 = scmp.eq.s32.totalorder %s9, 1
    %p69 = scmp.ne.s32.totalorder %s64, %s66
    %p70 = scmp.eq.s32.totalorder %s9, 0
    %p71 = por %p69, %p70
    %p72 = scmp.ne.s32.totalorder %s64, %s66
    %p73 = scmp.eq.s32.totalorder %s14, 1
    %p74 = por %p72, %p73
    %p75 = scmp.ne.s32.totalorder %s66, %s67
    %p76 = scmp.eq.s32.totalorder %s14, 0
    %p77 = por %p75, %p76
    %p78 = scmp.ne.s32.totalorder %s66, %s67
    %p79 = scmp.eq.s32.totalorder %s15, 1
    %p80 = por %p78, %p79
    %p82 = scmp.ne.s32.totalorder %s67, %s81
    %p83 = scmp.eq.s32.totalorder %s15, 0
    %p84 = por %p82, %p83
    %s85 = ssub.s32 %s9, %s16
    %p86 = scmp.eq.s32.totalorder %s85, 0
    %s88 = sadd.s32 %s87, 1
    %s89 = scalar_select %p86, %s87, %s88
    %p92 = pneg %p86
    %p93 = scmp.eq.s32.totalorder %s9, 1
    %p94 = por %p92, %p93
    %p95 = scmp.ne.s32.totalorder %s87, %s90
    %p96 = scmp.eq.s32.totalorder %s9, 0
    %p97 = por %p95, %p96
    %p98 = scmp.ne.s32.totalorder %s87, %s90
    %p99 = scmp.eq.s32.totalorder %s14, 1
    %p100 = por %p98, %p99
    %p101 = scmp.ne.s32.totalorder %s90, %s91
    %p102 = scmp.eq.s32.totalorder %s14, 0
    %p103 = por %p101, %p102
    %p104 = scmp.ne.s32.totalorder %s90, %s91
    %p105 = scmp.eq.s32.totalorder %s15, 1
    %p106 = por %p104, %p105
    %p108 = scmp.ne.s32.totalorder %s91, %s107
    %p109 = scmp.eq.s32.totalorder %s15, 0
    %p110 = por %p108, %p109
    %p111 = scmp.le.s32.totalorder 1, %s9
    %p112 = scmp.lt.s32.totalorder %s9, 3
    %p113 = pnand %p111, %p112
    %p114 = pneg %p113
    // Predicated region
    $region9: #{sc_conv_forward.3} parent=5 // pred_check
      _
    $region10: #{sc_conv_forward.3} parent=5 // pred_check_branch
      %116 = sbr.rel (%p113) target = $region12
    $region11: #{sc_conv_forward.3} parent=5 // pred_region
      %s117 = ssub.s32 %s9, 1
      // Predicated region
      $region13: #{sc_conv_forward.3} parent=11 // pred_check
        %p118 = pneg %p56
      $region14: #{sc_conv_forward.3} parent=11 // pred_check_branch
        %120 = sbr.rel (%p118) target = $region16
      $region15: #{sc_conv_forward.3} parent=11 // pred_region
        _
      $region16: #{sc_conv_forward.3} parent=11 // pred_fallthru
        _
      // Predicated region
      $region17: #{sc_conv_forward.3} parent=11 // pred_check
        %p121 = pneg %p77
      $region18: #{sc_conv_forward.3} parent=11 // pred_check_branch
        %123 = sbr.rel (%p121) target = $region20
      $region19: #{sc_conv_forward.3} parent=11 // pred_region
        _
      $region20: #{sc_conv_forward.3} parent=11 // pred_fallthru
        _
    $region12: #{sc_conv_forward.3} parent=5 // pred_fallthru
      _
    %p124 = scmp.lt.s32.totalorder %s9, 2
    // Predicated region
    $region21: #{sc_conv_forward.3} parent=5 // pred_check
      %p125 = pneg %p124
    $region22: #{sc_conv_forward.3} parent=5 // pred_check_branch
      %127 = sbr.rel (%p125) target = $region24
    $region23: #{sc_conv_forward.3} parent=5 // pred_region
      // Predicated region
      $region25: #{sc_conv_forward.3} parent=23 // pred_check
        %p128 = pneg %p29
      $region26: #{sc_conv_forward.3} parent=23 // pred_check_branch
        %130 = sbr.rel (%p128) target = $region28
      $region27: #{sc_conv_forward.3} parent=23 // pred_region
        %s131 = smul.u32 2, %s9
        %p132 = scmp.lt.s32.totalorder %s131, 3
        %s133 = scalar_select %p132, %s131, 3
        %s134 = smul.addr %s133, 7
        %s135 = smul.addr %s134, 4
        %s136 = scalar_lea.vmem %s0, %s135
        %s137 = smul.u32 2, %s9
      $region28: #{sc_conv_forward.3} parent=23 // pred_fallthru
        _
    $region24: #{sc_conv_forward.3} parent=5 // pred_fallthru
      _
    %p138 = scmp.le.s32.totalorder 1, %s9
    %p139 = scmp.lt.s32.totalorder %s9, 3
    %p140 = pnand %p138, %p139
    %p141 = pneg %p140
    // Predicated region
    $region29: #{sc_conv_forward.3} parent=5 // pred_check
      _
    $region30: #{sc_conv_forward.3} parent=5 // pred_check_branch
      %143 = sbr.rel (%p140) target = $region32
    $region31: #{sc_conv_forward.3} parent=5 // pred_region
      %s144 = ssub.s32 %s9, 1
      %s145 = smul.u32 2, %s14
      %p146 = scmp.lt.s32.totalorder %s145, 3
      %s147 = scalar_select %p146, %s145, 3
      %s148 = smul.addr %s147, 7
      %s149 = smul.addr %s148, 4
      %s150 = scalar_lea.vmem %s0, %s149
      %p151 = pneg %p35
      %p152 = pneg %p32
      %p153 = pneg %p56
      %p154 = pneg %p53
      %p155 = pneg %p77
      %p156 = pneg %p74
      %p157 = pneg %p103
      %p158 = pneg %p100
      %s159 = smul.u32 2, %s14
      %p160 = scmp.lt.s32.totalorder %s159, 3
      %s161 = scalar_select %p160, %s159, 3
      %s162 = smul.addr %s161, 8
      %s163 = scalar_lea.vmem %s3, %s162
      %s164 = smul.u32 2, %s14
      %p165 = scmp.lt.s32.totalorder %s164, 3
      %s166 = scalar_select %p165, %s164, 3
      %s167 = smul.addr %s166, 7
      %s168 = smul.addr %s167, 4
      %s169 = scalar_lea.vmem %s0, %s168
      %s170 = smul.u32 2, %s14
      %s171 = smul.u32 2, %s14
      %p172 = scmp.lt.s32.totalorder %s171, 3
      %s173 = scalar_select %p172, %s171, 3
      %s174 = smul.addr %s173, 8
      %s175 = scalar_lea.vmem %s3, %s174
      %s176 = smul.u32 2, %s14
      %v178 = vld [vmem:[%s169] sm:$0xff]
      %v179 = vld [vmem:[%s169 + $0x8] sm:$0xff]
      %v180 = vld [vmem:[%s169 + $0x10] sm:$0xff]
      %v181 = vld [vmem:[%s169 + $0x18] sm:$0xf]
      %v182 = vld [vmem:[%s169 + $0x1c] sm:$0xff]
      %v183 = vld [vmem:[%s169 + $0x24] sm:$0xff]
      %v184 = vld [vmem:[%s169 + $0x2c] sm:$0xff]
      %v185 = vld [vmem:[%s169 + $0x34] sm:$0xf]
      %v186 = vld [vmem:[%s1] sm:$0xf]
      %v187 = vld [vmem:[%s1 + $0x4] sm:$0xf]
      %v188 = vld [vmem:[%s1 + $0x8] sm:$0xf]
      %v189 = vld [vmem:[%s1 + $0xc] sm:$0xf]
      %v190 = vld [vmem:[%s1 + $0x10] sm:$0xf]
      %v191 = vld [vmem:[%s1 + $0x14] sm:$0xf]
      %v192 = vld [vmem:[%s1 + $0x18] sm:$0xf]
      %v193 = vld [vmem:[%s1 + $0x1c] sm:$0xf]
      %v194 = vld [vmem:[%s1 + $0x20] sm:$0xf]
      %v195 = vld [vmem:[%s1 + $0x24] sm:$0xf]
      %v196 = vld [vmem:[%s1 + $0x28] sm:$0xf]
      %v197 = vld [vmem:[%s1 + $0x2c] sm:$0xf]
      %v198 = vld [vmem:[%s1 + $0x30] sm:$0xf]
      %v199 = vld [vmem:[%s1 + $0x34] sm:$0xf]
      %v200 = vld [vmem:[%s1 + $0x38] sm:$0xf]
      %v201 = vld [vmem:[%s1 + $0x3c] sm:$0xf]
      %v202 = vld [vmem:[%s1 + $0x40] sm:$0xf]
      %v203 = vld [vmem:[%s1 + $0x44] sm:$0xf]
      %v204 = vld [vmem:[%s1 + $0x48] sm:$0xf]
      %v205 = vld [vmem:[%s1 + $0x4c] sm:$0xf]
      %v206 = vld [vmem:[%s1 + $0x50] sm:$0xf]
      %v207 = vld [vmem:[%s1 + $0x54] sm:$0xf]
      %v208 = vld [vmem:[%s1 + $0x58] sm:$0xf]
      %v209 = vld [vmem:[%s1 + $0x5c] sm:$0xf]
      %v210 = vld [vmem:[%s1 + $0x60] sm:$0xf]
      %v211 = vld [vmem:[%s1 + $0x64] sm:$0xf]
      %v212 = vld [vmem:[%s1 + $0x68] sm:$0xf]
      %v213 = vld [vmem:[%s1 + $0x6c] sm:$0xf]
      %v214 = vld [vmem:[%s1 + $0x70] sm:$0xf]
      %v215 = vld [vmem:[%s1 + $0x74] sm:$0xf]
      %v216 = vld [vmem:[%s1 + $0x78] sm:$0xf]
      %v217 = vld [vmem:[%s1 + $0x7c] sm:$0xf]
      %v218 = vld [vmem:[%s1 + $0x80] sm:$0xf]
      %v219 = vld [vmem:[%s1 + $0x84] sm:$0xf]
      %v220 = vld [vmem:[%s1 + $0x88] sm:$0xf]
      %v221 = vld [vmem:[%s1 + $0x8c] sm:$0xf]
      %v222 = vld [vmem:[%s1 + $0x90] sm:$0xf]
      %v223 = vld [vmem:[%s1 + $0x94] sm:$0xf]
      %v224 = vld [vmem:[%s1 + $0x98] sm:$0xf]
      %v225 = vld [vmem:[%s1 + $0x9c] sm:$0xf]
      %v226 = vld [vmem:[%s1 + $0xa0] sm:$0xf]
      %v227 = vld [vmem:[%s1 + $0xa4] sm:$0xf]
      %v228 = vld [vmem:[%s1 + $0xa8] sm:$0xf]
      %v229 = vld [vmem:[%s1 + $0xac] sm:$0xf]
      %v230 = vld [vmem:[%s1 + $0xb0] sm:$0xf]
      %v231 = vld [vmem:[%s1 + $0xb4] sm:$0xf]
      %v232 = vld [vmem:[%s1 + $0xb8] sm:$0xf]
      %v233 = vld [vmem:[%s1 + $0xbc] sm:$0xf]
      %v234 = vld [vmem:[%s1 + $0xc0] sm:$0xf]
      %v235 = vld [vmem:[%s1 + $0xc4] sm:$0xf]
      %v236 = vld [vmem:[%s1 + $0xc8] sm:$0xf]
      %v237 = vld [vmem:[%s1 + $0xcc] sm:$0xf]
      %v238 = vld [vmem:[%s1 + $0xd0] sm:$0xf]
      %v239 = vld [vmem:[%s1 + $0xd4] sm:$0xf]
      %v240 = vld [vmem:[%s1 + $0xd8] sm:$0xf]
      %v241 = vld [vmem:[%s1 + $0xdc] sm:$0xf]
      %v242 = vld [vmem:[%s1 + $0xe0] sm:$0xf]
      %v243 = vld [vmem:[%s1 + $0xe4] sm:$0xf]
      %v244 = vld [vmem:[%s1 + $0xe8] sm:$0xf]
      %v245 = vld [vmem:[%s1 + $0xec] sm:$0xf]
      %v246 = vld [vmem:[%s1 + $0xf0] sm:$0xf]
      %v247 = vld [vmem:[%s1 + $0xf4] sm:$0xf]
      %v248 = vld [vmem:[%s1 + $0xf8] sm:$0xf]
      %v249 = vld [vmem:[%s1 + $0xfc] sm:$0xf]
      %v250 = vld [vmem:[%s1 + $0x100] sm:$0xf]
      %v251 = vld [vmem:[%s1 + $0x104] sm:$0xf]
      %v252 = vld [vmem:[%s1 + $0x108] sm:$0xf]
      %v253 = vld [vmem:[%s1 + $0x10c] sm:$0xf]
      %v254 = vld [vmem:[%s1 + $0x110] sm:$0xf]
      %v255 = vld [vmem:[%s1 + $0x114] sm:$0xf]
      %v256 = vld [vmem:[%s1 + $0x118] sm:$0xf]
      %v257 = vld [vmem:[%s1 + $0x11c] sm:$0xf]
      %v258 = vld [vmem:[%s1 + $0x120] sm:$0xf]
      %v259 = vld [vmem:[%s1 + $0x124] sm:$0xf]
      %v260 = vld [vmem:[%s1 + $0x128] sm:$0xf]
      %v261 = vld [vmem:[%s1 + $0x12c] sm:$0xf]
      %v262 = vld [vmem:[%s1 + $0x130] sm:$0xf]
      %v263 = vld [vmem:[%s1 + $0x134] sm:$0xf]
      %v264 = vld [vmem:[%s1 + $0x138] sm:$0xf]
      %v265 = vld [vmem:[%s1 + $0x13c] sm:$0xf]
      %v266 = vld [vmem:[%s1 + $0x140] sm:$0xf]
      %v267 = vld [vmem:[%s1 + $0x144] sm:$0xf]
      %v268 = vld [vmem:[%s1 + $0x148] sm:$0xf]
      %v269 = vld [vmem:[%s1 + $0x14c] sm:$0xf]
      %v270 = vld [vmem:[%s1 + $0x150] sm:$0xf]
      %v271 = vld [vmem:[%s1 + $0x154] sm:$0xf]
      %v272 = vld [vmem:[%s1 + $0x158] sm:$0xf]
      %v273 = vld [vmem:[%s1 + $0x15c] sm:$0xf]
      %v274 = vld [vmem:[%s1 + $0x160] sm:$0xf]
      %v275 = vld [vmem:[%s1 + $0x164] sm:$0xf]
      %v276 = vld [vmem:[%s1 + $0x168] sm:$0xf]
      %v277 = vld [vmem:[%s1 + $0x16c] sm:$0xf]
      %v278 = vld [vmem:[%s1 + $0x170] sm:$0xf]
      %v279 = vld [vmem:[%s1 + $0x174] sm:$0xf]
      %v280 = vld [vmem:[%s1 + $0x178] sm:$0xf]
      %v281 = vld [vmem:[%s1 + $0x17c] sm:$0xf]
      %v282 = vld [vmem:[%s1 + $0x180] sm:$0xf]
      %v283 = vld [vmem:[%s1 + $0x184] sm:$0xf]
      %v284 = vld [vmem:[%s1 + $0x188] sm:$0xf]
      %v285 = vld [vmem:[%s1 + $0x18c] sm:$0xf]
      %v286 = vld [vmem:[%s1 + $0x190] sm:$0xf]
      %v287 = vld [vmem:[%s1 + $0x194] sm:$0xf]
      %v288 = vld [vmem:[%s1 + $0x198] sm:$0xf]
      %v289 = vld [vmem:[%s1 + $0x19c] sm:$0xf]
      %v290 = vld [vmem:[%s1 + $0x1a0] sm:$0xf]
      %v291 = vld [vmem:[%s1 + $0x1a4] sm:$0xf]
      %v292 = vld [vmem:[%s1 + $0x1a8] sm:$0xf]
      %v293 = vld [vmem:[%s1 + $0x1ac] sm:$0xf]
      %v294 = vld [vmem:[%s2] sm:$0x1]
      %v296 = vlaneseq
      %v297 = vshrl.u32 %v296, 7
      %v298 = vsub.s32 0, %v297
      %v299 = vrot.slane %v294, %v298
      %v309 = vunpack.c.l.b16 %v178
      %v310 = vunpack.c.h.b16 %v178
      %v311 = vunpack.c.l.b16 %v179
      %v312 = vunpack.c.h.b16 %v179
      %v313 = vunpack.c.l.b16 %v180
      %v314 = vunpack.c.h.b16 %v180
      %v315 = vunpack.c.l.b16 %v181
      %v316 = vunpack.c.l.b16 %v182
      %v317 = vunpack.c.h.b16 %v182
      %v318 = vunpack.c.l.b16 %v183
      %v319 = vunpack.c.h.b16 %v183
      %v320 = vunpack.c.l.b16 %v184
      %v321 = vunpack.c.h.b16 %v184
      %v322 = vunpack.c.l.b16 %v185
      %v323 = vpack.c.b16 %v316, %v309
      %v324 = vpack.c.b16 %v317, %v310
      %v325 = vpack.c.b16 %v318, %v311
      %v326 = vpack.c.b16 %v319, %v312
      %v327 = vpack.c.b16 %v320, %v313
      %v328 = vpack.c.b16 %v321, %v314
      %v329 = vpack.c.b16 %v322, %v315
      %v444 = vunpack.c.l.b16 %v186
      %v445 = vunpack.c.l.b16 %v187
      %v446 = vunpack.c.l.b16 %v188
      %v447 = vunpack.c.l.b16 %v189
      %v448 = vunpack.c.l.b16 %v190
      %v449 = vunpack.c.l.b16 %v191
      %v450 = vunpack.c.l.b16 %v192
      %v451 = vunpack.c.l.b16 %v193
      %v452 = vunpack.c.l.b16 %v194
      %v453 = vunpack.c.l.b16 %v195
      %v454 = vunpack.c.l.b16 %v196
      %v455 = vunpack.c.l.b16 %v197
      %v456 = vunpack.c.l.b16 %v198
      %v457 = vunpack.c.l.b16 %v199
      %v458 = vunpack.c.l.b16 %v200
      %v459 = vunpack.c.l.b16 %v201
      %v460 = vunpack.c.l.b16 %v202
      %v461 = vunpack.c.l.b16 %v203
      %v462 = vunpack.c.l.b16 %v204
      %v463 = vunpack.c.l.b16 %v205
      %v464 = vunpack.c.l.b16 %v206
      %v465 = vunpack.c.l.b16 %v207
      %v466 = vunpack.c.l.b16 %v208
      %v467 = vunpack.c.l.b16 %v209
      %v468 = vunpack.c.l.b16 %v210
      %v469 = vunpack.c.l.b16 %v211
      %v470 = vunpack.c.l.b16 %v212
      %v471 = vunpack.c.l.b16 %v213
      %v472 = vunpack.c.l.b16 %v214
      %v473 = vunpack.c.l.b16 %v215
      %v474 = vunpack.c.l.b16 %v216
      %v475 = vunpack.c.l.b16 %v217
      %v476 = vunpack.c.l.b16 %v218
      %v477 = vunpack.c.l.b16 %v219
      %v478 = vunpack.c.l.b16 %v220
      %v479 = vunpack.c.l.b16 %v221
      %v480 = vunpack.c.l.b16 %v222
      %v481 = vunpack.c.l.b16 %v223
      %v482 = vunpack.c.l.b16 %v224
      %v483 = vunpack.c.l.b16 %v225
      %v484 = vunpack.c.l.b16 %v226
      %v485 = vunpack.c.l.b16 %v227
      %v486 = vunpack.c.l.b16 %v228
      %v487 = vunpack.c.l.b16 %v229
      %v488 = vunpack.c.l.b16 %v230
      %v489 = vunpack.c.l.b16 %v231
      %v490 = vunpack.c.l.b16 %v232
      %v491 = vunpack.c.l.b16 %v233
      %v492 = vunpack.c.l.b16 %v234
      %v493 = vunpack.c.l.b16 %v235
      %v494 = vunpack.c.l.b16 %v236
      %v495 = vunpack.c.l.b16 %v237
      %v496 = vunpack.c.l.b16 %v238
      %v497 = vunpack.c.l.b16 %v239
      %v498 = vunpack.c.l.b16 %v240
      %v499 = vunpack.c.l.b16 %v241
      %v500 = vunpack.c.l.b16 %v242
      %v501 = vunpack.c.l.b16 %v243
      %v502 = vunpack.c.l.b16 %v244
      %v503 = vunpack.c.l.b16 %v245
      %v504 = vunpack.c.l.b16 %v246
      %v505 = vunpack.c.l.b16 %v247
      %v506 = vunpack.c.l.b16 %v248
      %v507 = vunpack.c.l.b16 %v249
      %v508 = vunpack.c.l.b16 %v250
      %v509 = vunpack.c.l.b16 %v251
      %v510 = vunpack.c.l.b16 %v252
      %v511 = vunpack.c.l.b16 %v253
      %v512 = vunpack.c.l.b16 %v254
      %v513 = vunpack.c.l.b16 %v255
      %v514 = vunpack.c.l.b16 %v256
      %v515 = vunpack.c.l.b16 %v257
      %v516 = vunpack.c.l.b16 %v258
      %v517 = vunpack.c.l.b16 %v259
      %v518 = vunpack.c.l.b16 %v260
      %v519 = vunpack.c.l.b16 %v261
      %v520 = vunpack.c.l.b16 %v262
      %v521 = vunpack.c.l.b16 %v263
      %v522 = vunpack.c.l.b16 %v264
      %v523 = vunpack.c.l.b16 %v265
      %v524 = vunpack.c.l.b16 %v266
      %v525 = vunpack.c.l.b16 %v267
      %v526 = vunpack.c.l.b16 %v268
      %v527 = vunpack.c.l.b16 %v269
      %v528 = vunpack.c.l.b16 %v270
      %v529 = vunpack.c.l.b16 %v271
      %v530 = vunpack.c.l.b16 %v272
      %v531 = vunpack.c.l.b16 %v273
      %v532 = vunpack.c.l.b16 %v274
      %v533 = vunpack.c.l.b16 %v275
      %v534 = vunpack.c.l.b16 %v276
      %v535 = vunpack.c.l.b16 %v277
      %v536 = vunpack.c.l.b16 %v278
      %v537 = vunpack.c.l.b16 %v279
      %v538 = vunpack.c.l.b16 %v280
      %v539 = vunpack.c.l.b16 %v281
      %v540 = vunpack.c.l.b16 %v282
      %v541 = vunpack.c.l.b16 %v283
      %v542 = vunpack.c.l.b16 %v284
      %v543 = vunpack.c.l.b16 %v285
      %v544 = vunpack.c.l.b16 %v286
      %v545 = vunpack.c.l.b16 %v287
      %v546 = vunpack.c.l.b16 %v288
      %v547 = vunpack.c.l.b16 %v289
      %v548 = vunpack.c.l.b16 %v290
      %v549 = vunpack.c.l.b16 %v291
      %v550 = vunpack.c.l.b16 %v292
      %v551 = vunpack.c.l.b16 %v293
      %v552 = vpack.c.b16 %v445, %v444
      %v553 = vpack.c.b16 %v447, %v446
      %v554 = vpack.c.b16 %v449, %v448
      %v555 = vpack.c.b16 %v451, %v450
      %v556 = vpack.c.b16 %v453, %v452
      %v557 = vpack.c.b16 %v455, %v454
      %v558 = vpack.c.b16 %v457, %v456
      %v559 = vpack.c.b16 %v459, %v458
      %v560 = vpack.c.b16 %v461, %v460
      %v561 = vpack.c.b16 %v463, %v462
      %v562 = vpack.c.b16 %v465, %v464
      %v563 = vpack.c.b16 %v467, %v466
      %v564 = vpack.c.b16 %v469, %v468
      %v565 = vpack.c.b16 %v471, %v470
      %v566 = vpack.c.b16 %v473, %v472
      %v567 = vpack.c.b16 %v475, %v474
      %v568 = vpack.c.b16 %v477, %v476
      %v569 = vpack.c.b16 %v479, %v478
      %v570 = vpack.c.b16 %v481, %v480
      %v571 = vpack.c.b16 %v483, %v482
      %v572 = vpack.c.b16 %v485, %v484
      %v573 = vpack.c.b16 %v487, %v486
      %v574 = vpack.c.b16 %v489, %v488
      %v575 = vpack.c.b16 %v491, %v490
      %v576 = vpack.c.b16 %v493, %v492
      %v577 = vpack.c.b16 %v495, %v494
      %v578 = vpack.c.b16 %v497, %v496
      %v579 = vpack.c.b16 %v499, %v498
      %v580 = vpack.c.b16 %v501, %v500
      %v581 = vpack.c.b16 %v503, %v502
      %v582 = vpack.c.b16 %v505, %v504
      %v583 = vpack.c.b16 %v507, %v506
      %v584 = vpack.c.b16 %v509, %v508
      %v585 = vpack.c.b16 %v511, %v510
      %v586 = vpack.c.b16 %v513, %v512
      %v587 = vpack.c.b16 %v515, %v514
      %v588 = vpack.c.b16 %v517, %v516
      %v589 = vpack.c.b16 %v519, %v518
      %v590 = vpack.c.b16 %v521, %v520
      %v591 = vpack.c.b16 %v523, %v522
      %v592 = vpack.c.b16 %v525, %v524
      %v593 = vpack.c.b16 %v527, %v526
      %v594 = vpack.c.b16 %v529, %v528
      %v595 = vpack.c.b16 %v531, %v530
      %v596 = vpack.c.b16 %v533, %v532
      %v597 = vpack.c.b16 %v535, %v534
      %v598 = vpack.c.b16 %v537, %v536
      %v599 = vpack.c.b16 %v539, %v538
      %v600 = vpack.c.b16 %v541, %v540
      %v601 = vpack.c.b16 %v543, %v542
      %v602 = vpack.c.b16 %v545, %v544
      %v603 = vpack.c.b16 %v547, %v546
      %v604 = vpack.c.b16 %v549, %v548
      %v605 = vpack.c.b16 %v551, %v550
      %vm660 = vcmask 785408
      %v662 = vsel %vm660, %v329, 0
      %664 = vmatprep.subr.bf16.mxu0 0
      %665 = vmatpush1.bf16.msra.mxu0 %v552
      %666 = vmatprep.subr.bf16.mxu0 0
      %667 = vmatpush1.bf16.msra.mxu0 %v553
      %668 = vmatprep.subr.bf16.mxu0 0
      %669 = vmatpush1.bf16.msra.mxu0 %v554
      %670 = vmatprep.subr.bf16.mxu0 0
      %671 = vmatpush1.bf16.msra.mxu0 %v555
      %672 = vmatprep.subr.bf16.mxu0 0
      %673 = vmatpush1.bf16.msra.mxu0 %v556
      %674 = vmatprep.subr.bf16.mxu0 0
      %675 = vmatpush1.bf16.msra.mxu0 %v557
      %676 = vmatprep.subr.bf16.mxu0 0
      %677 = vmatpush1.bf16.msra.mxu0 %v558
      %678 = vmatprep.subr.bf16.mxu0 0
      %679 = vmatpush1.bf16.msra.mxu0 %v559
      %680 = vmatprep.subr.bf16.mxu0 0
      %681 = vmatpush1.bf16.msra.mxu0 %v560
      %682 = vmatprep.subr.bf16.mxu0 0
      %683 = vmatpush1.bf16.msra.mxu0 %v561
      %684 = vmatprep.subr.bf16.mxu0 0
      %685 = vmatpush1.bf16.msra.mxu0 %v562
      %686 = vmatprep.subr.bf16.mxu0 0
      %687 = vmatpush1.bf16.msra.mxu0 %v563
      %688 = vmatprep.subr.bf16.mxu0 0
      %689 = vmatpush1.bf16.msra.mxu0 %v564
      %690 = vmatprep.subr.bf16.mxu0 0
      %691 = vmatpush1.bf16.msra.mxu0 %v565
      %692 = vmatprep.subr.bf16.mxu0 0
      %693 = vmatpush1.bf16.msra.mxu0 %v566
      %694 = vmatprep.subr.bf16.mxu0 0
      %695 = vmatpush1.bf16.msra.mxu0 %v567
      %696 = vmatprep.mubr.bf16.mxu0 %v324
      %697 = vmatmul.mubr.bf16.gmra.mrb[0].mxu0 %v323
      %v698 = vpop.f32.mrb[0].mxu0
      %v699 = vadd.f32 %v299, %v698
      %v700 = vpop.f32.mrb[0].mxu0
      %v701 = vpop.f32.mrb[0].mxu0
      %v702 = vadd.f32 %v299, %v701
      %v703 = vpop.f32.mrb[0].mxu0
      %704 = vdwg.mxu0
      %705 = vmatprep.subr.bf16.mxu0 0
      %706 = vmatpush1.bf16.msra.mxu0 %v568
      %707 = vmatprep.subr.bf16.mxu0 0
      %708 = vmatpush1.bf16.msra.mxu0 %v569
      %709 = vmatprep.subr.bf16.mxu0 0
      %710 = vmatpush1.bf16.msra.mxu0 %v570
      %711 = vmatprep.subr.bf16.mxu0 0
      %712 = vmatpush1.bf16.msra.mxu0 %v571
      %713 = vmatprep.subr.bf16.mxu0 0
      %714 = vmatpush1.bf16.msra.mxu0 %v572
      %715 = vmatprep.subr.bf16.mxu0 0
      %716 = vmatpush1.bf16.msra.mxu0 %v573
      %717 = vmatprep.subr.bf16.mxu0 0
      %718 = vmatpush1.bf16.msra.mxu0 %v574
      %719 = vmatprep.subr.bf16.mxu0 0
      %720 = vmatpush1.bf16.msra.mxu0 %v575
      %721 = vmatprep.subr.bf16.mxu0 0
      %722 = vmatpush1.bf16.msra.mxu0 %v576
      %723 = vmatprep.subr.bf16.mxu0 0
      %724 = vmatpush1.bf16.msra.mxu0 %v577
      %725 = vmatprep.subr.bf16.mxu0 0
      %726 = vmatpush1.bf16.msra.mxu0 %v578
      %727 = vmatprep.subr.bf16.mxu0 0
      %728 = vmatpush1.bf16.msra.mxu0 %v579
      %729 = vmatprep.subr.bf16.mxu0 0
      %730 = vmatpush1.bf16.msra.mxu0 %v580
      %731 = vmatprep.subr.bf16.mxu0 0
      %732 = vmatpush1.bf16.msra.mxu0 %v581
      %733 = vmatprep.subr.bf16.mxu0 0
      %734 = vmatpush1.bf16.msra.mxu0 %v582
      %735 = vmatprep.subr.bf16.mxu0 0
      %736 = vmatpush1.bf16.msra.mxu0 %v583
      %737 = vmatprep.mubr.bf16.mxu0 %v326
      %738 = vmatmul.mubr.bf16.gmra.mrb[0].mxu0 %v325
      %v739 = vpop.f32.mrb[0].mxu0
      %v740 = vadd.f32 %v699, %v739
      %v741 = vpop.f32.mrb[0].mxu0
      %v742 = vpop.f32.mrb[0].mxu0
      %v743 = vadd.f32 %v702, %v742
      %v744 = vpop.f32.mrb[0].mxu0
      %745 = vdwg.mxu0
      %746 = vmatprep.subr.bf16.mxu0 0
      %747 = vmatpush1.bf16.msra.mxu0 %v584
      %748 = vmatprep.subr.bf16.mxu0 0
      %749 = vmatpush1.bf16.msra.mxu0 %v585
      %750 = vmatprep.subr.bf16.mxu0 0
      %751 = vmatpush1.bf16.msra.mxu0 %v586
      %752 = vmatprep.subr.bf16.mxu0 0
      %753 = vmatpush1.bf16.msra.mxu0 %v587
      %754 = vmatprep.subr.bf16.mxu0 0
      %755 = vmatpush1.bf16.msra.mxu0 %v588
      %756 = vmatprep.subr.bf16.mxu0 0
      %757 = vmatpush1.bf16.msra.mxu0 %v589
      %758 = vmatprep.subr.bf16.mxu0 0
      %759 = vmatpush1.bf16.msra.mxu0 %v590
      %760 = vmatprep.subr.bf16.mxu0 0
      %761 = vmatpush1.bf16.msra.mxu0 %v591
      %762 = vmatprep.subr.bf16.mxu0 0
      %763 = vmatpush1.bf16.msra.mxu0 %v592
      %764 = vmatprep.subr.bf16.mxu0 0
      %765 = vmatpush1.bf16.msra.mxu0 %v593
      %766 = vmatprep.subr.bf16.mxu0 0
      %767 = vmatpush1.bf16.msra.mxu0 %v594
      %768 = vmatprep.subr.bf16.mxu0 0
      %769 = vmatpush1.bf16.msra.mxu0 %v595
      %770 = vmatprep.subr.bf16.mxu0 0
      %771 = vmatpush1.bf16.msra.mxu0 %v596
      %772 = vmatprep.subr.bf16.mxu0 0
      %773 = vmatpush1.bf16.msra.mxu0 %v597
      %774 = vmatprep.subr.bf16.mxu0 0
      %775 = vmatpush1.bf16.msra.mxu0 %v598
      %776 = vmatprep.subr.bf16.mxu0 0
      %777 = vmatpush1.bf16.msra.mxu0 %v599
      %778 = vmatprep.mubr.bf16.mxu0 %v328
      %779 = vmatmul.mubr.bf16.gmra.mrb[0].mxu0 %v327
      %v780 = vpop.f32.mrb[0].mxu0
      %v781 = vadd.f32 %v740, %v780
      %v782 = vpop.f32.mrb[0].mxu0
      %v783 = vpop.f32.mrb[0].mxu0
      %v784 = vadd.f32 %v743, %v783
      %v785 = vpop.f32.mrb[0].mxu0
      %786 = vdwg.mxu0
      %787 = vmatprep.subr.bf16.mxu0 0
      %788 = vmatpush1.bf16.msra.mxu0 %v600
      %789 = vmatprep.subr.bf16.mxu0 0
      %790 = vmatpush1.bf16.msra.mxu0 %v601
      %791 = vmatprep.subr.bf16.mxu0 0
      %792 = vmatpush1.bf16.msra.mxu0 %v602
      %793 = vmatprep.subr.bf16.mxu0 0
      %794 = vmatpush1.bf16.msra.mxu0 %v603
      %795 = vmatprep.subr.bf16.mxu0 0
      %796 = vmatpush1.bf16.msra.mxu0 %v604
      %797 = vmatprep.subr.bf16.mxu0 0
      %798 = vmatpush1.bf16.msra.mxu0 %v605
      %799 = vmatprep.subr.bf16.mxu0 0
      %800 = vmatpush1.bf16.msra.mxu0 0
      %801 = vmatprep.subr.bf16.mxu0 0
      %802 = vmatpush1.bf16.msra.mxu0 0
      %803 = vmatprep.subr.bf16.mxu0 0
      %804 = vmatpush1.bf16.msra.mxu0 0
      %805 = vmatprep.subr.bf16.mxu0 0
      %806 = vmatpush1.bf16.msra.mxu0 0
      %807 = vmatprep.subr.bf16.mxu0 0
      %808 = vmatpush1.bf16.msra.mxu0 0
      %809 = vmatprep.subr.bf16.mxu0 0
      %810 = vmatpush1.bf16.msra.mxu0 0
      %811 = vmatprep.subr.bf16.mxu0 0
      %812 = vmatpush1.bf16.msra.mxu0 0
      %813 = vmatprep.subr.bf16.mxu0 0
      %814 = vmatpush1.bf16.msra.mxu0 0
      %815 = vmatprep.subr.bf16.mxu0 0
      %816 = vmatpush1.bf16.msra.mxu0 0
      %817 = vmatprep.subr.bf16.mxu0 0
      %818 = vmatpush1.bf16.msra.mxu0 0
      %819 = vmatprep.mubr.bf16.mxu0 0
      %820 = vmatmul.mubr.bf16.gmra.mrb[0].mxu0 %v662
      %v821 = vpop.f32.mrb[0].mxu0
      %v822 = vadd.f32 %v781, %v821
      %v823 = vpop.f32.mrb[0].mxu0
      %v824 = vpop.f32.mrb[0].mxu0
      %v825 = vadd.f32 %v784, %v824
      %v826 = vpop.f32.mrb[0].mxu0
      %827 = vdwg.mxu0
      %828 = vst [vmem:[%s175] sm:$0xff] %v822
      %829 = vst [vmem:[%s175 + $0x8] sm:$0xff] %v825
      %s830 = smul.u32 2, %s14
      %p831 = scmp.lt.s32.totalorder %s830, 3
      %s832 = scalar_select %p831, %s830, 3
      %s833 = smul.addr %s832, 8
      %s834 = scalar_lea.vmem %s3, %s833
      // Predicated region
      $region33: #{sc_conv_forward.3} parent=31 // pred_check
        %p835 = pneg %p100
      $region34: #{sc_conv_forward.3} parent=31 // pred_check_branch
        %837 = sbr.rel (%p835) target = $region36
      $region35: #{sc_conv_forward.3} parent=31 // pred_region
        %s838 = smul.u32 2, %s14
      $region36: #{sc_conv_forward.3} parent=31 // pred_fallthru
        _
    $region32: #{sc_conv_forward.3} parent=5 // pred_fallthru
      _
    %p839 = scmp.le.s32.totalorder 2, %s9
    // Predicated region
    $region37: #{sc_conv_forward.3} parent=5 // pred_check
      %p840 = pneg %p839
    $region38: #{sc_conv_forward.3} parent=5 // pred_check_branch
      %842 = sbr.rel (%p840) target = $region40
    $region39: #{sc_conv_forward.3} parent=5 // pred_region
      %s843 = ssub.s32 %s9, 2
      // Predicated region
      $region41: #{sc_conv_forward.3} parent=39 // pred_check
        %p844 = pneg %p106
      $region42: #{sc_conv_forward.3} parent=39 // pred_check_branch
        %846 = sbr.rel (%p844) target = $region44
      $region43: #{sc_conv_forward.3} parent=39 // pred_region
        %s847 = smul.u32 2, %s15
        %p848 = scmp.lt.s32.totalorder %s847, 3
        %s849 = scalar_select %p848, %s847, 3
        %s850 = smul.addr %s849, 8
        %s851 = scalar_lea.vmem %s3, %s850
      $region44: #{sc_conv_forward.3} parent=39 // pred_fallthru
        _
    $region40: #{sc_conv_forward.3} parent=5 // pred_fallthru
      _
  $region6: #{sc_conv_forward.3} parent=0 // loop_footer
    %s13 = sadd.s32 1, %s9
  $region7: #{sc_conv_forward.3} parent=0 // loop_footer_branch
    %8 = sbr.rel target = $region3
  $region8: #{sc_conv_forward.3} parent=0 // loop_exit
    _

</llo_original>
